<compile_context>
chip_gen: v7x
topology: tpu7x:2x2x1
jax: 0.10.0
libtpu: 0.0.40
codegen_flags: <defaults>
</compile_context>

<pallas_src>
import functools
import math

import jax
import jax.numpy as jnp
import numpy as np
from jax.experimental import pallas as pl
from jax.experimental.pallas import tpu as pltpu


# ----------------------------------------------------------------------------
# Packed-output lane layout
# ----------------------------------------------------------------------------
def _layout(H, n_agents, state_dim_d):
    AD = n_agents * state_dim_d
    W_used = AD + 3 + n_agents                 # goal | v1 | v2 | v | logp
    Wp = ((W_used + 2 * H + 127) // 128) * 128  # + h lanes + c lanes, lane-dense
    h_lane = Wp - 2 * H
    c_lane = Wp - H
    BW = max(4 * H, Wp)                        # bias-slab width
    return dict(AD=AD, W_used=W_used, Wp=Wp, h_lane=h_lane, c_lane=c_lane, BW=BW)


# ----------------------------------------------------------------------------
# Pallas kernel
# ----------------------------------------------------------------------------
def _manager_kernel(T, Bp, H, Wp, c_lane, same_goal, *refs):
    f32 = jnp.float32
    if same_goal:
        (x_ref, hc_ref, w1t_ref, wlstm_ref, wheads_ref, bias_ref,
         packed_ref) = refs
    else:
        (x_ref, hc_ref, w1t_ref, wlstm_ref, wheads_ref, bias_ref,
         sstack_ref, epscat_ref, packed_ref) = refs

    # bias slab: row0 = fc1 bias, row1 = b_ih + b_hh, row2 = fused head bias
    b1 = bias_ref[0:1, 0:H]
    blstm = bias_ref[1:2, 0:4 * H]
    bheads = bias_ref[2:3, 0:Wp]

    # fc1 + relu over all timesteps at once: (T*Bp, feat) @ (feat, H)
    feats = jnp.maximum(
        jnp.dot(x_ref[...], w1t_ref[...], preferred_element_type=f32) + b1, 0.0)

    wih_t = wlstm_ref[0:H, :]          # (H, 4H)
    whh_t = wlstm_ref[H:2 * H, :]      # (H, 4H)

    # input contribution to all LSTM gates, all timesteps at once
    gates_x = jnp.dot(feats, wih_t, preferred_element_type=f32) + blstm   # (T*Bp, 4H)

    # eps / eps^2 / bias contribution (independent of the recurrence):
    #   lanes [0:AD)              += std*eps           (goal sampling)
    #   lanes [AD+3:AD+3+n_ag)    += -0.5*sum(eps^2)   (logp; const in bias)
    if same_goal:
        pre = bheads                                            # (1, Wp)
    else:
        pre = (jnp.dot(epscat_ref[...], sstack_ref[...],
                       preferred_element_type=f32) + bheads)    # (T*Bp, Wp)

    h = hc_ref[0:Bp, :]                # (Bp, H)
    c = hc_ref[Bp:2 * Bp, :]           # (Bp, H)
    w_heads = wheads_ref[...]          # (H, Wp): mu | v1 | v2 | v | I(h)

    # LSTM recurrence over T (static unroll, T small).  The per-step head
    # matmul is independent of step t+1, so it fills idle MXU cycles while
    # the next step's gate chain (EUP/VPU) runs.  Each write is a full
    # unmasked lane-dense (Bp, Wp) block.
    for t in range(T):
        gall = gates_x[t * Bp:(t + 1) * Bp, :] + jnp.dot(
            h, whh_t, preferred_element_type=f32)               # (Bp, 4H)
        sg = jax.nn.sigmoid(gall)          # one EUP pass over the full vreg
        th = jnp.tanh(gall)
        i_g = sg[:, 0:H]
        f_g = sg[:, H:2 * H]
        g_g = th[:, 2 * H:3 * H]
        o_g = sg[:, 3 * H:4 * H]
        c = f_g * c + i_g * g_g
        h = o_g * jnp.tanh(c)
        pre_t = pre if same_goal else pre[t * Bp:(t + 1) * Bp, :]
        packed_ref[t * Bp:(t + 1) * Bp, :] = (
            jnp.dot(h, w_heads, preferred_element_type=f32) + pre_t)

    # last-step cell state into the free top lanes of the last row block
    # (one masked 32-lane store; h_n already landed via identity columns).
    packed_ref[(T - 1) * Bp:T * Bp, c_lane:c_lane + H] = c


# ----------------------------------------------------------------------------
# One-time parameter packing (hoisted out of the per-call forward path)
# ----------------------------------------------------------------------------
def prepare_manager_params(params, *, n_agents, state_dim_d):
    f32 = jnp.float32
    H = params["w1"].shape[0]
    D = state_dim_d
    lay = _layout(H, n_agents, D)
    AD, Wp, h_lane, BW = lay["AD"], lay["Wp"], lay["h_lane"], lay["BW"]

    w1t = params["w1"].T.astype(f32)                                   # (feat, H)
    w_lstm = jnp.concatenate(
        [params["w_ih"].T, params["w_hh"].T], axis=0).astype(f32)      # (2H, 4H)

    # fused head weights: mu | v1 | v2 | v=0.5(v1+v2) | identity (copies h)
    w_heads = jnp.zeros((H, Wp), f32)
    w_heads = w_heads.at[:, :AD].set(params["w_mu"].T)
    w_heads = w_heads.at[:, AD].set(params["w_v1"][0])
    w_heads = w_heads.at[:, AD + 1].set(params["w_v2"][0])
    w_heads = w_heads.at[:, AD + 2].set(0.5 * (params["w_v1"][0] + params["w_v2"][0]))
    w_heads = w_heads.at[jnp.arange(H), h_lane + jnp.arange(H)].set(1.0)

    logp_const = -jnp.sum(params["logstd"]) - 0.5 * D * math.log(2.0 * math.pi)
    b_heads = jnp.zeros((Wp,), f32)
    b_heads = b_heads.at[:AD].set(params["b_mu"])
    b_heads = b_heads.at[AD].set(params["b_v1"][0])
    b_heads = b_heads.at[AD + 1].set(params["b_v2"][0])
    b_heads = b_heads.at[AD + 2].set(0.5 * (params["b_v1"][0] + params["b_v2"][0]))
    b_heads = b_heads.at[AD + 3:AD + 3 + n_agents].set(logp_const)

    # bias slab: row0 fc1 bias, row1 pre-summed LSTM bias, row2 head bias
    bias3 = jnp.zeros((3, BW), f32)
    bias3 = bias3.at[0, :H].set(params["b1"])
    bias3 = bias3.at[1, :4 * H].set(params["b_ih"] + params["b_hh"])
    bias3 = bias3.at[2, :Wp].set(b_heads)

    # stacked eps weights: rows [0:AD) -> std*eps into goal lanes,
    #                      rows [AD:2AD) -> -0.5*eps^2 into logp lanes
    std_full = jnp.exp(jnp.tile(params["logstd"], n_agents))            # (AD,)
    rows = jnp.arange(AD)
    s_stack = jnp.zeros((2 * AD, Wp), f32)
    s_stack = s_stack.at[rows, rows].set(std_full)
    s_stack = s_stack.at[AD + rows, AD + 3 + rows // D].set(-0.5)

    return {"w1t": w1t, "w_lstm": w_lstm, "w_heads": w_heads,
            "bias3": bias3, "s_stack": s_stack}


# ----------------------------------------------------------------------------
# Forward wrapper (jitted; only per-call data glue remains here)
# ----------------------------------------------------------------------------
@functools.partial(jax.jit,
                   static_argnames=("n_agents", "state_dim_d", "force_same_goal"))
def feudal_manager_forward(packed_params, inputs, hidden, eps, *,
                           n_agents, state_dim_d, force_same_goal=False):
    """inputs: (T, B, feat) f32; hidden: (h, c) each (1, B, H); eps: (T, B, n_agents*D)."""
    f32 = jnp.float32
    T, B, feat = inputs.shape
    H = packed_params["w1t"].shape[1]
    D = state_dim_d
    lay = _layout(H, n_agents, D)
    AD, Wp, h_lane, c_lane = lay["AD"], lay["Wp"], lay["h_lane"], lay["c_lane"]

    # batch padding to full 8-sublane tiles
    Bp = ((B + 7) // 8) * 8
    pad_b = Bp - B

    def pad_batch(a, axis):
        if pad_b == 0:
            return a
        pads = [(0, 0)] * a.ndim
        pads[axis] = (0, pad_b)
        return jnp.pad(a, pads)

    x2 = pad_batch(inputs.astype(f32), 1).reshape(T * Bp, feat)
    h0 = pad_batch(hidden[0][0].astype(f32), 0)                 # (Bp, H)
    c0 = pad_batch(hidden[1][0].astype(f32), 0)                 # (Bp, H)
    hc0 = jnp.concatenate([h0, c0], axis=0)                     # (2*Bp, H)

    args = [x2, hc0, packed_params["w1t"], packed_params["w_lstm"],
            packed_params["w_heads"], packed_params["bias3"]]
    if not force_same_goal:
        eps2 = pad_batch(eps.astype(f32), 1).reshape(T * Bp, AD)
        eps_cat = jnp.concatenate([eps2, eps2 * eps2], axis=1)  # (T*Bp, 2*AD)
        args += [packed_params["s_stack"], eps_cat]

    kernel = functools.partial(_manager_kernel, T, Bp, H, Wp, c_lane,
                               force_same_goal)
    vspec = pl.BlockSpec(memory_space=pltpu.MemorySpace.VMEM)

    packed = pl.pallas_call(
        kernel,
        out_shape=jax.ShapeDtypeStruct((T * Bp, Wp), f32),
        in_specs=[vspec] * len(args),
        out_specs=vspec,
    )(*args)

    # unpack / strip padding
    p3 = packed.reshape(T, Bp, Wp)
    pb = p3[:, :B, :]
    goal = pb[..., :AD].reshape(T, B, n_agents, D)
    v1 = pb[..., AD]
    v2 = pb[..., AD + 1]
    val = pb[..., AD + 2]
    logp = pb[..., AD + 3:AD + 3 + n_agents]
    h_n = p3[T - 1, :B, h_lane:h_lane + H][None]
    c_n = p3[T - 1, :B, c_lane:c_lane + H][None]
    return goal, logp, val, (v1, v2), (h_n, c_n)


# ----------------------------------------------------------------------------
# Deterministic parameter init (PyTorch-default-ish uniform, synthetic)
# ----------------------------------------------------------------------------
def init_params(key, feat, H, n_agents, state_dim_d):
    AD = n_agents * state_dim_d
    ks = jax.random.split(key, 12)

    def u(k, shape, fan_in):
        bound = 1.0 / math.sqrt(fan_in)
        return jax.random.uniform(k, shape, jnp.float32, -bound, bound)

    return {
        "w1": u(ks[0], (H, feat), feat),
        "b1": u(ks[1], (H,), feat),
        "w_ih": u(ks[2], (4 * H, H), H),
        "w_hh": u(ks[3], (4 * H, H), H),
        "b_ih": u(ks[4], (4 * H,), H),
        "b_hh": u(ks[5], (4 * H,), H),
        "w_mu": u(ks[6], (AD, H), H),
        "b_mu": u(ks[7], (AD,), H),
        "logstd": jnp.zeros((state_dim_d,), jnp.float32),   # nn.Parameter(zeros)
        "w_v1": u(ks[8], (1, H), H),
        "b_v1": u(ks[9], (1,), H),
        "w_v2": u(ks[10], (1, H), H),
        "b_v2": u(ks[11], (1,), H),
    }


# ----------------------------------------------------------------------------
# Pure-JAX reference (for correctness check)
# ----------------------------------------------------------------------------
def reference_forward(params, inputs, hidden, eps, n_agents, state_dim_d,
                      force_same_goal=False):
    T, B, _ = inputs.shape
    H = params["w1"].shape[0]
    feats = jax.nn.relu(inputs @ params["w1"].T + params["b1"])
    h, c = hidden[0][0], hidden[1][0]
    outs = []
    for t in range(T):
        gates = (feats[t] @ params["w_ih"].T + params["b_ih"]
                 + h @ params["w_hh"].T + params["b_hh"])
        i_g = jax.nn.sigmoid(gates[:, :H])
        f_g = jax.nn.sigmoid(gates[:, H:2 * H])
        g_g = jnp.tanh(gates[:, 2 * H:3 * H])
        o_g = jax.nn.sigmoid(gates[:, 3 * H:])
        c = f_g * c + i_g * g_g
        h = o_g * jnp.tanh(c)
        outs.append(h)
    out = jnp.stack(outs, 0)                                   # (T, B, H)
    mu = out @ params["w_mu"].T + params["b_mu"]
    mu = mu.reshape(T, B, n_agents, state_dim_d)
    std = jnp.exp(params["logstd"])
    g = mu if force_same_goal else mu + std * eps.reshape(mu.shape)
    z = (g - mu) / std
    logp = jnp.sum(-0.5 * z * z - params["logstd"] - 0.5 * math.log(2 * math.pi), -1)
    v1 = (out @ params["w_v1"].T + params["b_v1"]).squeeze(-1)
    v2 = (out @ params["w_v2"].T + params["b_v2"]).squeeze(-1)
    return g, logp, 0.5 * (v1 + v2), (v1, v2), (h[None], c[None])


# ----------------------------------------------------------------------------
if __name__ == "__main__":
    T, B, feat = 8, 4, 32
    H = 32
    n_agents, state_dim_d = 4, 8

    key = jax.random.PRNGKey(0)
    kp, kx, ke = jax.random.split(key, 3)

    params = init_params(kp, feat, H, n_agents, state_dim_d)
    inputs = jax.random.normal(kx, (T, B, feat), jnp.float32)
    eps = jax.random.normal(ke, (T, B, n_agents * state_dim_d), jnp.float32)
    hidden = (jnp.zeros((1, B, H), jnp.float32), jnp.zeros((1, B, H), jnp.float32))

    # one-time weight packing (hoisted out of the per-call path)
    packed_params = jax.tree_util.tree_map(
        jax.block_until_ready,
        prepare_manager_params(params, n_agents=n_agents, state_dim_d=state_dim_d))

    goal, logp, val, val12, (h_n, c_n) = feudal_manager_forward(
        packed_params, inputs, hidden, eps,
        n_agents=n_agents, state_dim_d=state_dim_d, force_same_goal=False)
    jax.block_until_ready((goal, logp, val, val12, h_n, c_n))

    # correctness check against pure-JAX reference (sampling path)
    r_goal, r_logp, r_val, r_val12, (r_h, r_c) = reference_forward(
        params, inputs, hidden, eps, n_agents, state_dim_d, force_same_goal=False)
    np.testing.assert_allclose(np.asarray(goal), np.asarray(r_goal), atol=1e-3, rtol=1e-3)
    np.testing.assert_allclose(np.asarray(logp), np.asarray(r_logp), atol=1e-3, rtol=1e-3)
    np.testing.assert_allclose(np.asarray(val), np.asarray(r_val), atol=1e-3, rtol=1e-3)
    np.testing.assert_allclose(np.asarray(val12[0]), np.asarray(r_val12[0]), atol=1e-3, rtol=1e-3)
    np.testing.assert_allclose(np.asarray(val12[1]), np.asarray(r_val12[1]), atol=1e-3, rtol=1e-3)
    np.testing.assert_allclose(np.asarray(h_n), np.asarray(r_h), atol=1e-3, rtol=1e-3)
    np.testing.assert_allclose(np.asarray(c_n), np.asarray(r_c), atol=1e-3, rtol=1e-3)

    # correctness check for force_same_goal path (statically specialized kernel)
    goal2, logp2, val2, _, (h_n2, c_n2) = feudal_manager_forward(
        packed_params, inputs, hidden, eps,
        n_agents=n_agents, state_dim_d=state_dim_d, force_same_goal=True)
    jax.block_until_ready((goal2, logp2, val2, h_n2, c_n2))
    r_goal2, r_logp2, r_val2, _, (r_h2, r_c2) = reference_forward(
        params, inputs, hidden, eps, n_agents, state_dim_d, force_same_goal=True)
    np.testing.assert_allclose(np.asarray(goal2), np.asarray(r_goal2), atol=1e-3, rtol=1e-3)
    np.testing.assert_allclose(np.asarray(logp2), np.asarray(r_logp2), atol=1e-3, rtol=1e-3)
    np.testing.assert_allclose(np.asarray(val2), np.asarray(r_val2), atol=1e-3, rtol=1e-3)
    np.testing.assert_allclose(np.asarray(h_n2), np.asarray(r_h2), atol=1e-3, rtol=1e-3)
    np.testing.assert_allclose(np.asarray(c_n2), np.asarray(r_c2), atol=1e-3, rtol=1e-3)

    print("KERNEL_OK")
</pallas_src>

<mosaic_0001>
module attributes {stable_mosaic.version = 11 : i64} {
  func.func @_manager_kernel(%arg0: memref<64x32xf32, #tpu.memory_space<vmem>>, %arg1: memref<16x32xf32, #tpu.memory_space<vmem>>, %arg2: memref<32x32xf32, #tpu.memory_space<vmem>>, %arg3: memref<64x128xf32, #tpu.memory_space<vmem>>, %arg4: memref<32x128xf32, #tpu.memory_space<vmem>>, %arg5: memref<3x128xf32, #tpu.memory_space<vmem>>, %arg6: memref<64x128xf32, #tpu.memory_space<vmem>>, %arg7: memref<64x64xf32, #tpu.memory_space<vmem>>, %arg8: memref<64x128xf32, #tpu.memory_space<vmem>>) attributes {dimension_semantics = [], scalar_prefetch = 0 : i64, scratch_operands = 0 : i64, tpu.core_type = #tpu.core_type<tc>} {
    %c0 = arith.constant 0 : index
    %c0_0 = arith.constant 0 : index
    %0 = vector.load %arg5[%c0, %c0_0] : memref<3x128xf32, #tpu.memory_space<vmem>>, vector<1x32xf32>
    %c1 = arith.constant 1 : index
    %c0_1 = arith.constant 0 : index
    %1 = vector.load %arg5[%c1, %c0_1] : memref<3x128xf32, #tpu.memory_space<vmem>>, vector<1x128xf32>
    %c2 = arith.constant 2 : index
    %c0_2 = arith.constant 0 : index
    %2 = vector.load %arg5[%c2, %c0_2] : memref<3x128xf32, #tpu.memory_space<vmem>>, vector<1x128xf32>
    %c0_3 = arith.constant 0 : index
    %c0_4 = arith.constant 0 : index
    %3 = vector.load %arg0[%c0_3, %c0_4] : memref<64x32xf32, #tpu.memory_space<vmem>>, vector<64x32xf32>
    %c0_5 = arith.constant 0 : index
    %c0_6 = arith.constant 0 : index
    %4 = vector.load %arg2[%c0_5, %c0_6] : memref<32x32xf32, #tpu.memory_space<vmem>>, vector<32x32xf32>
    %cst = arith.constant dense<0.000000e+00> : vector<64x32xf32>
    %5 = tpu.matmul %3, %4, %cst {dimension_numbers = #tpu.dot_dimension_numbers<[1], [0], [0], [1], [0, 0, 1, 1], [], []>} : vector<64x32xf32>, vector<32x32xf32>, vector<64x32xf32> -> vector<64x32xf32>
    %6 = vector.broadcast %0 : vector<1x32xf32> to vector<64x32xf32>
    %7 = arith.addf %5, %6 : vector<64x32xf32>
    %cst_7 = arith.constant 0.000000e+00 : f32
    %8 = vector.broadcast %cst_7 : f32 to vector<64x32xf32>
    %9 = arith.maximumf %7, %8 : vector<64x32xf32>
    %c0_8 = arith.constant 0 : index
    %c0_9 = arith.constant 0 : index
    %10 = vector.load %arg3[%c0_8, %c0_9] : memref<64x128xf32, #tpu.memory_space<vmem>>, vector<32x128xf32>
    %c32 = arith.constant 32 : index
    %c0_10 = arith.constant 0 : index
    %11 = vector.load %arg3[%c32, %c0_10] : memref<64x128xf32, #tpu.memory_space<vmem>>, vector<32x128xf32>
    %cst_11 = arith.constant dense<0.000000e+00> : vector<64x128xf32>
    %12 = tpu.matmul %9, %10, %cst_11 {dimension_numbers = #tpu.dot_dimension_numbers<[1], [0], [0], [1], [0, 0, 1, 1], [], []>} : vector<64x32xf32>, vector<32x128xf32>, vector<64x128xf32> -> vector<64x128xf32>
    %13 = vector.broadcast %1 : vector<1x128xf32> to vector<64x128xf32>
    %14 = arith.addf %12, %13 : vector<64x128xf32>
    %c0_12 = arith.constant 0 : index
    %c0_13 = arith.constant 0 : index
    %15 = vector.load %arg7[%c0_12, %c0_13] : memref<64x64xf32, #tpu.memory_space<vmem>>, vector<64x64xf32>
    %c0_14 = arith.constant 0 : index
    %c0_15 = arith.constant 0 : index
    %16 = vector.load %arg6[%c0_14, %c0_15] : memref<64x128xf32, #tpu.memory_space<vmem>>, vector<64x128xf32>
    %cst_16 = arith.constant dense<0.000000e+00> : vector<64x128xf32>
    %17 = tpu.matmul %15, %16, %cst_16 {dimension_numbers = #tpu.dot_dimension_numbers<[1], [0], [0], [1], [0, 0, 1, 1], [], []>} : vector<64x64xf32>, vector<64x128xf32>, vector<64x128xf32> -> vector<64x128xf32>
    %18 = vector.broadcast %2 : vector<1x128xf32> to vector<64x128xf32>
    %19 = arith.addf %17, %18 : vector<64x128xf32>
    %c0_17 = arith.constant 0 : index
    %c0_18 = arith.constant 0 : index
    %20 = vector.load %arg1[%c0_17, %c0_18] : memref<16x32xf32, #tpu.memory_space<vmem>>, vector<8x32xf32>
    %c8 = arith.constant 8 : index
    %c0_19 = arith.constant 0 : index
    %21 = vector.load %arg1[%c8, %c0_19] : memref<16x32xf32, #tpu.memory_space<vmem>>, vector<8x32xf32>
    %c0_20 = arith.constant 0 : index
    %c0_21 = arith.constant 0 : index
    %22 = vector.load %arg4[%c0_20, %c0_21] : memref<32x128xf32, #tpu.memory_space<vmem>>, vector<32x128xf32>
    %23 = vector.extract_strided_slice %14 {offsets = [0, 0], sizes = [8, 128], strides = [1, 1]} : vector<64x128xf32> to vector<8x128xf32>
    %cst_22 = arith.constant dense<0.000000e+00> : vector<8x128xf32>
    %24 = tpu.matmul %20, %11, %cst_22 {dimension_numbers = #tpu.dot_dimension_numbers<[1], [0], [0], [1], [0, 0, 1, 1], [], []>} : vector<8x32xf32>, vector<32x128xf32>, vector<8x128xf32> -> vector<8x128xf32>
    %25 = arith.addf %23, %24 : vector<8x128xf32>
    %26 = arith.negf %25 : vector<8x128xf32>
    %27 = math.exp %26 : vector<8x128xf32>
    %cst_23 = arith.constant 1.000000e+00 : f32
    %28 = vector.broadcast %cst_23 : f32 to vector<8x128xf32>
    %29 = arith.addf %28, %27 : vector<8x128xf32>
    %30 = arith.divf %28, %29 : vector<8x128xf32>
    %31 = math.tanh %25 : vector<8x128xf32>
    %32 = vector.extract_strided_slice %30 {offsets = [0, 0], sizes = [8, 32], strides = [1, 1]} : vector<8x128xf32> to vector<8x32xf32>
    %33 = vector.extract_strided_slice %30 {offsets = [0, 32], sizes = [8, 32], strides = [1, 1]} : vector<8x128xf32> to vector<8x32xf32>
    %34 = vector.extract_strided_slice %31 {offsets = [0, 64], sizes = [8, 32], strides = [1, 1]} : vector<8x128xf32> to vector<8x32xf32>
    %35 = vector.extract_strided_slice %30 {offsets = [0, 96], sizes = [8, 32], strides = [1, 1]} : vector<8x128xf32> to vector<8x32xf32>
    %36 = arith.mulf %33, %21 : vector<8x32xf32>
    %37 = arith.mulf %32, %34 : vector<8x32xf32>
    %38 = arith.addf %36, %37 : vector<8x32xf32>
    %39 = math.tanh %38 : vector<8x32xf32>
    %40 = arith.mulf %35, %39 : vector<8x32xf32>
    %41 = vector.extract_strided_slice %19 {offsets = [0, 0], sizes = [8, 128], strides = [1, 1]} : vector<64x128xf32> to vector<8x128xf32>
    %cst_24 = arith.constant dense<0.000000e+00> : vector<8x128xf32>
    %42 = tpu.matmul %40, %22, %cst_24 {dimension_numbers = #tpu.dot_dimension_numbers<[1], [0], [0], [1], [0, 0, 1, 1], [], []>} : vector<8x32xf32>, vector<32x128xf32>, vector<8x128xf32> -> vector<8x128xf32>
    %43 = arith.addf %42, %41 : vector<8x128xf32>
    %c0_25 = arith.constant 0 : index
    %c0_26 = arith.constant 0 : index
    %44 = vector.load %arg8[%c0_25, %c0_26] : memref<64x128xf32, #tpu.memory_space<vmem>>, vector<8x128xf32>
    tpu.vector_store %arg8[%c0_25, %c0_26], %43 {strides = array<i32>} : memref<64x128xf32, #tpu.memory_space<vmem>>, vector<8x128xf32>,
    %45 = vector.extract_strided_slice %14 {offsets = [8, 0], sizes = [8, 128], strides = [1, 1]} : vector<64x128xf32> to vector<8x128xf32>
    %cst_27 = arith.constant dense<0.000000e+00> : vector<8x128xf32>
    %46 = tpu.matmul %40, %11, %cst_27 {dimension_numbers = #tpu.dot_dimension_numbers<[1], [0], [0], [1], [0, 0, 1, 1], [], []>} : vector<8x32xf32>, vector<32x128xf32>, vector<8x128xf32> -> vector<8x128xf32>
    %47 = arith.addf %45, %46 : vector<8x128xf32>
    %48 = arith.negf %47 : vector<8x128xf32>
    %49 = math.exp %48 : vector<8x128xf32>
    %cst_28 = arith.constant 1.000000e+00 : f32
    %50 = vector.broadcast %cst_28 : f32 to vector<8x128xf32>
    %51 = arith.addf %50, %49 : vector<8x128xf32>
    %52 = arith.divf %50, %51 : vector<8x128xf32>
    %53 = math.tanh %47 : vector<8x128xf32>
    %54 = vector.extract_strided_slice %52 {offsets = [0, 0], sizes = [8, 32], strides = [1, 1]} : vector<8x128xf32> to vector<8x32xf32>
    %55 = vector.extract_strided_slice %52 {offsets = [0, 32], sizes = [8, 32], strides = [1, 1]} : vector<8x128xf32> to vector<8x32xf32>
    %56 = vector.extract_strided_slice %53 {offsets = [0, 64], sizes = [8, 32], strides = [1, 1]} : vector<8x128xf32> to vector<8x32xf32>
    %57 = vector.extract_strided_slice %52 {offsets = [0, 96], sizes = [8, 32], strides = [1, 1]} : vector<8x128xf32> to vector<8x32xf32>
    %58 = arith.mulf %55, %38 : vector<8x32xf32>
    %59 = arith.mulf %54, %56 : vector<8x32xf32>
    %60 = arith.addf %58, %59 : vector<8x32xf32>
    %61 = math.tanh %60 : vector<8x32xf32>
    %62 = arith.mulf %57, %61 : vector<8x32xf32>
    %63 = vector.extract_strided_slice %19 {offsets = [8, 0], sizes = [8, 128], strides = [1, 1]} : vector<64x128xf32> to vector<8x128xf32>
    %cst_29 = arith.constant dense<0.000000e+00> : vector<8x128xf32>
    %64 = tpu.matmul %62, %22, %cst_29 {dimension_numbers = #tpu.dot_dimension_numbers<[1], [0], [0], [1], [0, 0, 1, 1], [], []>} : vector<8x32xf32>, vector<32x128xf32>, vector<8x128xf32> -> vector<8x128xf32>
    %65 = arith.addf %64, %63 : vector<8x128xf32>
    %c8_30 = arith.constant 8 : index
    %c0_31 = arith.constant 0 : index
    %66 = vector.load %arg8[%c8_30, %c0_31] : memref<64x128xf32, #tpu.memory_space<vmem>>, vector<8x128xf32>
    tpu.vector_store %arg8[%c8_30, %c0_31], %65 {strides = array<i32>} : memref<64x128xf32, #tpu.memory_space<vmem>>, vector<8x128xf32>,
    %67 = vector.extract_strided_slice %14 {offsets = [16, 0], sizes = [8, 128], strides = [1, 1]} : vector<64x128xf32> to vector<8x128xf32>
    %cst_32 = arith.constant dense<0.000000e+00> : vector<8x128xf32>
    %68 = tpu.matmul %62, %11, %cst_32 {dimension_numbers = #tpu.dot_dimension_numbers<[1], [0], [0], [1], [0, 0, 1, 1], [], []>} : vector<8x32xf32>, vector<32x128xf32>, vector<8x128xf32> -> vector<8x128xf32>
    %69 = arith.addf %67, %68 : vector<8x128xf32>
    %70 = arith.negf %69 : vector<8x128xf32>
    %71 = math.exp %70 : vector<8x128xf32>
    %cst_33 = arith.constant 1.000000e+00 : f32
    %72 = vector.broadcast %cst_33 : f32 to vector<8x128xf32>
    %73 = arith.addf %72, %71 : vector<8x128xf32>
    %74 = arith.divf %72, %73 : vector<8x128xf32>
    %75 = math.tanh %69 : vector<8x128xf32>
    %76 = vector.extract_strided_slice %74 {offsets = [0, 0], sizes = [8, 32], strides = [1, 1]} : vector<8x128xf32> to vector<8x32xf32>
    %77 = vector.extract_strided_slice %74 {offsets = [0, 32], sizes = [8, 32], strides = [1, 1]} : vector<8x128xf32> to vector<8x32xf32>
    %78 = vector.extract_strided_slice %75 {offsets = [0, 64], sizes = [8, 32], strides = [1, 1]} : vector<8x128xf32> to vector<8x32xf32>
    %79 = vector.extract_strided_slice %74 {offsets = [0, 96], sizes = [8, 32], strides = [1, 1]} : vector<8x128xf32> to vector<8x32xf32>
    %80 = arith.mulf %77, %60 : vector<8x32xf32>
    %81 = arith.mulf %76, %78 : vector<8x32xf32>
    %82 = arith.addf %80, %81 : vector<8x32xf32>
    %83 = math.tanh %82 : vector<8x32xf32>
    %84 = arith.mulf %79, %83 : vector<8x32xf32>
    %85 = vector.extract_strided_slice %19 {offsets = [16, 0], sizes = [8, 128], strides = [1, 1]} : vector<64x128xf32> to vector<8x128xf32>
    %cst_34 = arith.constant dense<0.000000e+00> : vector<8x128xf32>
    %86 = tpu.matmul %84, %22, %cst_34 {dimension_numbers = #tpu.dot_dimension_numbers<[1], [0], [0], [1], [0, 0, 1, 1], [], []>} : vector<8x32xf32>, vector<32x128xf32>, vector<8x128xf32> -> vector<8x128xf32>
    %87 = arith.addf %86, %85 : vector<8x128xf32>
    %c16 = arith.constant 16 : index
    %c0_35 = arith.constant 0 : index
    %88 = vector.load %arg8[%c16, %c0_35] : memref<64x128xf32, #tpu.memory_space<vmem>>, vector<8x128xf32>
    tpu.vector_store %arg8[%c16, %c0_35], %87 {strides = array<i32>} : memref<64x128xf32, #tpu.memory_space<vmem>>, vector<8x128xf32>,
    %89 = vector.extract_strided_slice %14 {offsets = [24, 0], sizes = [8, 128], strides = [1, 1]} : vector<64x128xf32> to vector<8x128xf32>
    %cst_36 = arith.constant dense<0.000000e+00> : vector<8x128xf32>
    %90 = tpu.matmul %84, %11, %cst_36 {dimension_numbers = #tpu.dot_dimension_numbers<[1], [0], [0], [1], [0, 0, 1, 1], [], []>} : vector<8x32xf32>, vector<32x128xf32>, vector<8x128xf32> -> vector<8x128xf32>
    %91 = arith.addf %89, %90 : vector<8x128xf32>
    %92 = arith.negf %91 : vector<8x128xf32>
    %93 = math.exp %92 : vector<8x128xf32>
    %cst_37 = arith.constant 1.000000e+00 : f32
    %94 = vector.broadcast %cst_37 : f32 to vector<8x128xf32>
    %95 = arith.addf %94, %93 : vector<8x128xf32>
    %96 = arith.divf %94, %95 : vector<8x128xf32>
    %97 = math.tanh %91 : vector<8x128xf32>
    %98 = vector.extract_strided_slice %96 {offsets = [0, 0], sizes = [8, 32], strides = [1, 1]} : vector<8x128xf32> to vector<8x32xf32>
    %99 = vector.extract_strided_slice %96 {offsets = [0, 32], sizes = [8, 32], strides = [1, 1]} : vector<8x128xf32> to vector<8x32xf32>
    %100 = vector.extract_strided_slice %97 {offsets = [0, 64], sizes = [8, 32], strides = [1, 1]} : vector<8x128xf32> to vector<8x32xf32>
    %101 = vector.extract_strided_slice %96 {offsets = [0, 96], sizes = [8, 32], strides = [1, 1]} : vector<8x128xf32> to vector<8x32xf32>
    %102 = arith.mulf %99, %82 : vector<8x32xf32>
    %103 = arith.mulf %98, %100 : vector<8x32xf32>
    %104 = arith.addf %102, %103 : vector<8x32xf32>
    %105 = math.tanh %104 : vector<8x32xf32>
    %106 = arith.mulf %101, %105 : vector<8x32xf32>
    %107 = vector.extract_strided_slice %19 {offsets = [24, 0], sizes = [8, 128], strides = [1, 1]} : vector<64x128xf32> to vector<8x128xf32>
    %cst_38 = arith.constant dense<0.000000e+00> : vector<8x128xf32>
    %108 = tpu.matmul %106, %22, %cst_38 {dimension_numbers = #tpu.dot_dimension_numbers<[1], [0], [0], [1], [0, 0, 1, 1], [], []>} : vector<8x32xf32>, vector<32x128xf32>, vector<8x128xf32> -> vector<8x128xf32>
    %109 = arith.addf %108, %107 : vector<8x128xf32>
    %c24 = arith.constant 24 : index
    %c0_39 = arith.constant 0 : index
    %110 = vector.load %arg8[%c24, %c0_39] : memref<64x128xf32, #tpu.memory_space<vmem>>, vector<8x128xf32>
    tpu.vector_store %arg8[%c24, %c0_39], %109 {strides = array<i32>} : memref<64x128xf32, #tpu.memory_space<vmem>>, vector<8x128xf32>,
    %111 = vector.extract_strided_slice %14 {offsets = [32, 0], sizes = [8, 128], strides = [1, 1]} : vector<64x128xf32> to vector<8x128xf32>
    %cst_40 = arith.constant dense<0.000000e+00> : vector<8x128xf32>
    %112 = tpu.matmul %106, %11, %cst_40 {dimension_numbers = #tpu.dot_dimension_numbers<[1], [0], [0], [1], [0, 0, 1, 1], [], []>} : vector<8x32xf32>, vector<32x128xf32>, vector<8x128xf32> -> vector<8x128xf32>
    %113 = arith.addf %111, %112 : vector<8x128xf32>
    %114 = arith.negf %113 : vector<8x128xf32>
    %115 = math.exp %114 : vector<8x128xf32>
    %cst_41 = arith.constant 1.000000e+00 : f32
    %116 = vector.broadcast %cst_41 : f32 to vector<8x128xf32>
    %117 = arith.addf %116, %115 : vector<8x128xf32>
    %118 = arith.divf %116, %117 : vector<8x128xf32>
    %119 = math.tanh %113 : vector<8x128xf32>
    %120 = vector.extract_strided_slice %118 {offsets = [0, 0], sizes = [8, 32], strides = [1, 1]} : vector<8x128xf32> to vector<8x32xf32>
    %121 = vector.extract_strided_slice %118 {offsets = [0, 32], sizes = [8, 32], strides = [1, 1]} : vector<8x128xf32> to vector<8x32xf32>
    %122 = vector.extract_strided_slice %119 {offsets = [0, 64], sizes = [8, 32], strides = [1, 1]} : vector<8x128xf32> to vector<8x32xf32>
    %123 = vector.extract_strided_slice %118 {offsets = [0, 96], sizes = [8, 32], strides = [1, 1]} : vector<8x128xf32> to vector<8x32xf32>
    %124 = arith.mulf %121, %104 : vector<8x32xf32>
    %125 = arith.mulf %120, %122 : vector<8x32xf32>
    %126 = arith.addf %124, %125 : vector<8x32xf32>
    %127 = math.tanh %126 : vector<8x32xf32>
    %128 = arith.mulf %123, %127 : vector<8x32xf32>
    %129 = vector.extract_strided_slice %19 {offsets = [32, 0], sizes = [8, 128], strides = [1, 1]} : vector<64x128xf32> to vector<8x128xf32>
    %cst_42 = arith.constant dense<0.000000e+00> : vector<8x128xf32>
    %130 = tpu.matmul %128, %22, %cst_42 {dimension_numbers = #tpu.dot_dimension_numbers<[1], [0], [0], [1], [0, 0, 1, 1], [], []>} : vector<8x32xf32>, vector<32x128xf32>, vector<8x128xf32> -> vector<8x128xf32>
    %131 = arith.addf %130, %129 : vector<8x128xf32>
    %c32_43 = arith.constant 32 : index
    %c0_44 = arith.constant 0 : index
    %132 = vector.load %arg8[%c32_43, %c0_44] : memref<64x128xf32, #tpu.memory_space<vmem>>, vector<8x128xf32>
    tpu.vector_store %arg8[%c32_43, %c0_44], %131 {strides = array<i32>} : memref<64x128xf32, #tpu.memory_space<vmem>>, vector<8x128xf32>,
    %133 = vector.extract_strided_slice %14 {offsets = [40, 0], sizes = [8, 128], strides = [1, 1]} : vector<64x128xf32> to vector<8x128xf32>
    %cst_45 = arith.constant dense<0.000000e+00> : vector<8x128xf32>
    %134 = tpu.matmul %128, %11, %cst_45 {dimension_numbers = #tpu.dot_dimension_numbers<[1], [0], [0], [1], [0, 0, 1, 1], [], []>} : vector<8x32xf32>, vector<32x128xf32>, vector<8x128xf32> -> vector<8x128xf32>
    %135 = arith.addf %133, %134 : vector<8x128xf32>
    %136 = arith.negf %135 : vector<8x128xf32>
    %137 = math.exp %136 : vector<8x128xf32>
    %cst_46 = arith.constant 1.000000e+00 : f32
    %138 = vector.broadcast %cst_46 : f32 to vector<8x128xf32>
    %139 = arith.addf %138, %137 : vector<8x128xf32>
    %140 = arith.divf %138, %139 : vector<8x128xf32>
    %141 = math.tanh %135 : vector<8x128xf32>
    %142 = vector.extract_strided_slice %140 {offsets = [0, 0], sizes = [8, 32], strides = [1, 1]} : vector<8x128xf32> to vector<8x32xf32>
    %143 = vector.extract_strided_slice %140 {offsets = [0, 32], sizes = [8, 32], strides = [1, 1]} : vector<8x128xf32> to vector<8x32xf32>
    %144 = vector.extract_strided_slice %141 {offsets = [0, 64], sizes = [8, 32], strides = [1, 1]} : vector<8x128xf32> to vector<8x32xf32>
    %145 = vector.extract_strided_slice %140 {offsets = [0, 96], sizes = [8, 32], strides = [1, 1]} : vector<8x128xf32> to vector<8x32xf32>
    %146 = arith.mulf %143, %126 : vector<8x32xf32>
    %147 = arith.mulf %142, %144 : vector<8x32xf32>
    %148 = arith.addf %146, %147 : vector<8x32xf32>
    %149 = math.tanh %148 : vector<8x32xf32>
    %150 = arith.mulf %145, %149 : vector<8x32xf32>
    %151 = vector.extract_strided_slice %19 {offsets = [40, 0], sizes = [8, 128], strides = [1, 1]} : vector<64x128xf32> to vector<8x128xf32>
    %cst_47 = arith.constant dense<0.000000e+00> : vector<8x128xf32>
    %152 = tpu.matmul %150, %22, %cst_47 {dimension_numbers = #tpu.dot_dimension_numbers<[1], [0], [0], [1], [0, 0, 1, 1], [], []>} : vector<8x32xf32>, vector<32x128xf32>, vector<8x128xf32> -> vector<8x128xf32>
    %153 = arith.addf %152, %151 : vector<8x128xf32>
    %c40 = arith.constant 40 : index
    %c0_48 = arith.constant 0 : index
    %154 = vector.load %arg8[%c40, %c0_48] : memref<64x128xf32, #tpu.memory_space<vmem>>, vector<8x128xf32>
    tpu.vector_store %arg8[%c40, %c0_48], %153 {strides = array<i32>} : memref<64x128xf32, #tpu.memory_space<vmem>>, vector<8x128xf32>,
    %155 = vector.extract_strided_slice %14 {offsets = [48, 0], sizes = [8, 128], strides = [1, 1]} : vector<64x128xf32> to vector<8x128xf32>
    %cst_49 = arith.constant dense<0.000000e+00> : vector<8x128xf32>
    %156 = tpu.matmul %150, %11, %cst_49 {dimension_numbers = #tpu.dot_dimension_numbers<[1], [0], [0], [1], [0, 0, 1, 1], [], []>} : vector<8x32xf32>, vector<32x128xf32>, vector<8x128xf32> -> vector<8x128xf32>
    %157 = arith.addf %155, %156 : vector<8x128xf32>
    %158 = arith.negf %157 : vector<8x128xf32>
    %159 = math.exp %158 : vector<8x128xf32>
    %cst_50 = arith.constant 1.000000e+00 : f32
    %160 = vector.broadcast %cst_50 : f32 to vector<8x128xf32>
    %161 = arith.addf %160, %159 : vector<8x128xf32>
    %162 = arith.divf %160, %161 : vector<8x128xf32>
    %163 = math.tanh %157 : vector<8x128xf32>
    %164 = vector.extract_strided_slice %162 {offsets = [0, 0], sizes = [8, 32], strides = [1, 1]} : vector<8x128xf32> to vector<8x32xf32>
    %165 = vector.extract_strided_slice %162 {offsets = [0, 32], sizes = [8, 32], strides = [1, 1]} : vector<8x128xf32> to vector<8x32xf32>
    %166 = vector.extract_strided_slice %163 {offsets = [0, 64], sizes = [8, 32], strides = [1, 1]} : vector<8x128xf32> to vector<8x32xf32>
    %167 = vector.extract_strided_slice %162 {offsets = [0, 96], sizes = [8, 32], strides = [1, 1]} : vector<8x128xf32> to vector<8x32xf32>
    %168 = arith.mulf %165, %148 : vector<8x32xf32>
    %169 = arith.mulf %164, %166 : vector<8x32xf32>
    %170 = arith.addf %168, %169 : vector<8x32xf32>
    %171 = math.tanh %170 : vector<8x32xf32>
    %172 = arith.mulf %167, %171 : vector<8x32xf32>
    %173 = vector.extract_strided_slice %19 {offsets = [48, 0], sizes = [8, 128], strides = [1, 1]} : vector<64x128xf32> to vector<8x128xf32>
    %cst_51 = arith.constant dense<0.000000e+00> : vector<8x128xf32>
    %174 = tpu.matmul %172, %22, %cst_51 {dimension_numbers = #tpu.dot_dimension_numbers<[1], [0], [0], [1], [0, 0, 1, 1], [], []>} : vector<8x32xf32>, vector<32x128xf32>, vector<8x128xf32> -> vector<8x128xf32>
    %175 = arith.addf %174, %173 : vector<8x128xf32>
    %c48 = arith.constant 48 : index
    %c0_52 = arith.constant 0 : index
    %176 = vector.load %arg8[%c48, %c0_52] : memref<64x128xf32, #tpu.memory_space<vmem>>, vector<8x128xf32>
    tpu.vector_store %arg8[%c48, %c0_52], %175 {strides = array<i32>} : memref<64x128xf32, #tpu.memory_space<vmem>>, vector<8x128xf32>,
    %177 = vector.extract_strided_slice %14 {offsets = [56, 0], sizes = [8, 128], strides = [1, 1]} : vector<64x128xf32> to vector<8x128xf32>
    %cst_53 = arith.constant dense<0.000000e+00> : vector<8x128xf32>
    %178 = tpu.matmul %172, %11, %cst_53 {dimension_numbers = #tpu.dot_dimension_numbers<[1], [0], [0], [1], [0, 0, 1, 1], [], []>} : vector<8x32xf32>, vector<32x128xf32>, vector<8x128xf32> -> vector<8x128xf32>
    %179 = arith.addf %177, %178 : vector<8x128xf32>
    %180 = arith.negf %179 : vector<8x128xf32>
    %181 = math.exp %180 : vector<8x128xf32>
    %cst_54 = arith.constant 1.000000e+00 : f32
    %182 = vector.broadcast %cst_54 : f32 to vector<8x128xf32>
    %183 = arith.addf %182, %181 : vector<8x128xf32>
    %184 = arith.divf %182, %183 : vector<8x128xf32>
    %185 = math.tanh %179 : vector<8x128xf32>
    %186 = vector.extract_strided_slice %184 {offsets = [0, 0], sizes = [8, 32], strides = [1, 1]} : vector<8x128xf32> to vector<8x32xf32>
    %187 = vector.extract_strided_slice %184 {offsets = [0, 32], sizes = [8, 32], strides = [1, 1]} : vector<8x128xf32> to vector<8x32xf32>
    %188 = vector.extract_strided_slice %185 {offsets = [0, 64], sizes = [8, 32], strides = [1, 1]} : vector<8x128xf32> to vector<8x32xf32>
    %189 = vector.extract_strided_slice %184 {offsets = [0, 96], sizes = [8, 32], strides = [1, 1]} : vector<8x128xf32> to vector<8x32xf32>
    %190 = arith.mulf %187, %170 : vector<8x32xf32>
    %191 = arith.mulf %186, %188 : vector<8x32xf32>
    %192 = arith.addf %190, %191 : vector<8x32xf32>
    %193 = math.tanh %192 : vector<8x32xf32>
    %194 = arith.mulf %189, %193 : vector<8x32xf32>
    %195 = vector.extract_strided_slice %19 {offsets = [56, 0], sizes = [8, 128], strides = [1, 1]} : vector<64x128xf32> to vector<8x128xf32>
    %cst_55 = arith.constant dense<0.000000e+00> : vector<8x128xf32>
    %196 = tpu.matmul %194, %22, %cst_55 {dimension_numbers = #tpu.dot_dimension_numbers<[1], [0], [0], [1], [0, 0, 1, 1], [], []>} : vector<8x32xf32>, vector<32x128xf32>, vector<8x128xf32> -> vector<8x128xf32>
    %197 = arith.addf %196, %195 : vector<8x128xf32>
    %c56 = arith.constant 56 : index
    %c0_56 = arith.constant 0 : index
    %198 = vector.load %arg8[%c56, %c0_56] : memref<64x128xf32, #tpu.memory_space<vmem>>, vector<8x128xf32>
    tpu.vector_store %arg8[%c56, %c0_56], %197 {strides = array<i32>} : memref<64x128xf32, #tpu.memory_space<vmem>>, vector<8x128xf32>,
    %c56_57 = arith.constant 56 : index
    %c96 = arith.constant 96 : index
    %199 = vector.load %arg8[%c56_57, %c96] : memref<64x128xf32, #tpu.memory_space<vmem>>, vector<8x32xf32>
    tpu.vector_store %arg8[%c56_57, %c96], %192 {strides = array<i32>} : memref<64x128xf32, #tpu.memory_space<vmem>>, vector<8x32xf32>,
    return
  }
}

</mosaic_0001>

<llo_original>
// kernel: feudal_manager_forward.1
$region0: #{feudal_manager_forward.1}
  #allocation0 [shape = 'u32[]', space=smem, size = 0x4, offset = 0x4, fixed_abs, tag = 'smem constant byte address 0x4 - core index']
  #allocation1 [shape = 'u32[144,128]{1,0:T(1,128)}', space=vmem, size = 0x12000, scoped, tag = 'internal scratch']
  %s0 = inlined_call_operand.vmem [shape: f32[64,32], index: 0, kind: input, shape index: {}]
  %s1 = inlined_call_operand.vmem [shape: f32[16,32], index: 1, kind: input, shape index: {}]
  %s2 = inlined_call_operand.vmem [shape: f32[32,32], index: 2, kind: input, shape index: {}]
  %s3 = inlined_call_operand.vmem [shape: f32[64,128], index: 3, kind: input, shape index: {}]
  %s4 = inlined_call_operand.vmem [shape: f32[32,128], index: 4, kind: input, shape index: {}]
  %s5 = inlined_call_operand.vmem [shape: f32[3,128], index: 5, kind: input, shape index: {}]
  %s6 = inlined_call_operand.vmem [shape: f32[64,128], index: 6, kind: input, shape index: {}]
  %s7 = inlined_call_operand.vmem [shape: f32[64,64], index: 7, kind: input, shape index: {}]
  %s8 = inlined_call_operand.vmem [shape: f32[64,128], index: 8, kind: output, shape index: {}]
  %s9 = sld [smem:[#allocation0]]
  $region42: #{feudal_manager_forward.1} parent=0
    _
  %s11 = ssub.s32 1, %s9
  %s12 = scalar_select 0, %s11, %s9
  // Predicated region
  $region2: #{feudal_manager_forward.1} parent=0 // pred_check
    _
  $region3: #{feudal_manager_forward.1} parent=0 // pred_check_branch
    %14 = sbr.rel (0) target = $region5
  $region4: #{feudal_manager_forward.1} parent=0 // pred_region
    _
  $region5: #{feudal_manager_forward.1} parent=0 // pred_fallthru
    _
  // Predicated region
  $region6: #{feudal_manager_forward.1} parent=0 // pred_check
    _
  $region7: #{feudal_manager_forward.1} parent=0 // pred_check_branch
    %16 = sbr.rel (0) target = $region9
  $region8: #{feudal_manager_forward.1} parent=0 // pred_region
    _
  $region9: #{feudal_manager_forward.1} parent=0 // pred_fallthru
    _
  // Predicated region
  $region10: #{feudal_manager_forward.1} parent=0 // pred_check
    _
  $region11: #{feudal_manager_forward.1} parent=0 // pred_check_branch
    %18 = sbr.rel (0) target = $region13
  $region12: #{feudal_manager_forward.1} parent=0 // pred_region
    _
  $region13: #{feudal_manager_forward.1} parent=0 // pred_fallthru
    _
  // Predicated region
  $region14: #{feudal_manager_forward.1} parent=0 // pred_check
    _
  $region15: #{feudal_manager_forward.1} parent=0 // pred_check_branch
    %20 = sbr.rel (0) target = $region17
  $region16: #{feudal_manager_forward.1} parent=0 // pred_region
    _
  $region17: #{feudal_manager_forward.1} parent=0 // pred_fallthru
    _
  // Predicated region
  $region18: #{feudal_manager_forward.1} parent=0 // pred_check
    _
  $region19: #{feudal_manager_forward.1} parent=0 // pred_check_branch
    %22 = sbr.rel (0) target = $region21
  $region20: #{feudal_manager_forward.1} parent=0 // pred_region
    _
  $region21: #{feudal_manager_forward.1} parent=0 // pred_fallthru
    _
  // Predicated region
  $region22: #{feudal_manager_forward.1} parent=0 // pred_check
    _
  $region23: #{feudal_manager_forward.1} parent=0 // pred_check_branch
    %24 = sbr.rel (0) target = $region25
  $region24: #{feudal_manager_forward.1} parent=0 // pred_region
    _
  $region25: #{feudal_manager_forward.1} parent=0 // pred_fallthru
    _
  // Predicated region
  $region26: #{feudal_manager_forward.1} parent=0 // pred_check
    _
  $region27: #{feudal_manager_forward.1} parent=0 // pred_check_branch
    %26 = sbr.rel (0) target = $region29
  $region28: #{feudal_manager_forward.1} parent=0 // pred_region
    _
  $region29: #{feudal_manager_forward.1} parent=0 // pred_fallthru
    _
  // Predicated region
  $region30: #{feudal_manager_forward.1} parent=0 // pred_check
    _
  $region31: #{feudal_manager_forward.1} parent=0 // pred_check_branch
    %28 = sbr.rel (0) target = $region33
  $region32: #{feudal_manager_forward.1} parent=0 // pred_region
    _
  $region33: #{feudal_manager_forward.1} parent=0 // pred_fallthru
    _
  %v29 = vld [vmem:[%s5] sm:$0x1]
  %v30 = vld [vmem:[%s5 + $0x1] sm:$0x1]
  %v31 = vld [vmem:[%s5 + $0x2] sm:$0x1]
  %v32 = vld [vmem:[%s0] sm:$0xff]
  %v33 = vld [vmem:[%s0 + $0x8] sm:$0xff]
  %v34 = vld [vmem:[%s0 + $0x10] sm:$0xff]
  %v35 = vld [vmem:[%s0 + $0x18] sm:$0xff]
  %v36 = vld [vmem:[%s0 + $0x20] sm:$0xff]
  %v37 = vld [vmem:[%s0 + $0x28] sm:$0xff]
  %v38 = vld [vmem:[%s0 + $0x30] sm:$0xff]
  %v39 = vld [vmem:[%s0 + $0x38] sm:$0xff]
  %v40 = vld [vmem:[%s2] sm:$0xff]
  %v41 = vld [vmem:[%s2 + $0x8] sm:$0xff]
  %v42 = vld [vmem:[%s2 + $0x10] sm:$0xff]
  %v43 = vld [vmem:[%s2 + $0x18] sm:$0xff]
  %v44 = vlaneseq
  %v45 = vshrl.u32 %v44, 7
  %v46 = vsub.s32 0, %v45
  %v47 = vrot.slane %v29, %v46
  %vm48 = vcmask 261120
  %v50 = vsel %vm48, %v32, 0
  %v53 = vsel %vm48, %v33, 0
  %v56 = vsel %vm48, %v34, 0
  %v59 = vsel %vm48, %v35, 0
  %v62 = vsel %vm48, %v36, 0
  %v65 = vsel %vm48, %v37, 0
  %v68 = vsel %vm48, %v38, 0
  %v71 = vsel %vm48, %v39, 0
  %73 = vmatprep.subr.mxu0 0.0
  %74 = vmatpush1.msra.mxu0 %v40
  %75 = vmatprep.subr.mxu0 0.0
  %76 = vmatpush1.msra.mxu0 %v41
  %77 = vmatprep.subr.mxu0 0.0
  %78 = vmatpush1.msra.mxu0 %v42
  %79 = vmatprep.subr.mxu0 0.0
  %80 = vmatpush1.msra.mxu0 %v43
  %81 = vmatprep.subr.mxu0 0.0
  %82 = vmatpush1.msra.mxu0 0.0
  %83 = vmatprep.subr.mxu0 0.0
  %84 = vmatpush1.msra.mxu0 0.0
  %85 = vmatprep.subr.mxu0 0.0
  %86 = vmatpush1.msra.mxu0 0.0
  %87 = vmatprep.subr.mxu0 0.0
  %88 = vmatpush1.msra.mxu0 0.0
  %89 = vmatprep.subr.mxu0 0.0
  %90 = vmatpush1.msra.mxu0 0.0
  %91 = vmatprep.subr.mxu0 0.0
  %92 = vmatpush1.msra.mxu0 0.0
  %93 = vmatprep.subr.mxu0 0.0
  %94 = vmatpush1.msra.mxu0 0.0
  %95 = vmatprep.subr.mxu0 0.0
  %96 = vmatpush1.msra.mxu0 0.0
  %97 = vmatprep.subr.mxu0 0.0
  %98 = vmatpush1.msra.mxu0 0.0
  %99 = vmatprep.subr.mxu0 0.0
  %100 = vmatpush1.msra.mxu0 0.0
  %101 = vmatprep.subr.mxu0 0.0
  %102 = vmatpush1.msra.mxu0 0.0
  %103 = vmatprep.subr.mxu0 0.0
  %104 = vmatpush1.msra.mxu0 0.0
  %105 = vmatprep.subr.mxu0 0.0
  %106 = vmatpush1.msra.mxu0 0.0
  %107 = vmatprep.subr.mxu0 0.0
  %108 = vmatpush1.msra.mxu0 0.0
  %109 = vmatprep.subr.mxu0 0.0
  %110 = vmatpush1.msra.mxu0 0.0
  %111 = vmatprep.subr.mxu0 0.0
  %112 = vmatpush1.msra.mxu0 0.0
  %113 = vmatprep.subr.mxu0 0.0
  %114 = vmatpush1.msra.mxu0 0.0
  %115 = vmatprep.subr.mxu0 0.0
  %116 = vmatpush1.msra.mxu0 0.0
  %117 = vmatprep.subr.mxu0 0.0
  %118 = vmatpush1.msra.mxu0 0.0
  %119 = vmatprep.subr.mxu0 0.0
  %120 = vmatpush1.msra.mxu0 0.0
  %121 = vmatprep.subr.mxu0 0.0
  %122 = vmatpush1.msra.mxu0 0.0
  %123 = vmatprep.subr.mxu0 0.0
  %124 = vmatpush1.msra.mxu0 0.0
  %125 = vmatprep.subr.mxu0 0.0
  %126 = vmatpush1.msra.mxu0 0.0
  %127 = vmatprep.subr.mxu0 0.0
  %128 = vmatpush1.msra.mxu0 0.0
  %129 = vmatprep.subr.mxu0 0.0
  %130 = vmatpush1.msra.mxu0 0.0
  %131 = vmatprep.subr.mxu0 0.0
  %132 = vmatpush1.msra.mxu0 0.0
  %133 = vmatprep.subr.mxu0 0.0
  %134 = vmatpush1.msra.mxu0 0.0
  %135 = vmatprep.subr.mxu0 0.0
  %136 = vmatpush1.msra.mxu0 0.0
  %137 = vmatprep.mubr.f32.mxu0 0.0
  %138 = vmatmul.mubr.f32.gmra.mrb[0].mxu0 %v50
  %v139 = vpop.f32.mrb[0].mxu0
  %v140 = vadd.f32 %v47, %v139
  %v141 = vpop.f32.mrb[0].mxu0
  %142 = vmatprep.mubr.f32.mxu0 0.0
  %143 = vmatmul.mubr.f32.gmra.mrb[0].mxu0 %v53
  %v144 = vpop.f32.mrb[0].mxu0
  %v145 = vadd.f32 %v47, %v144
  %v146 = vpop.f32.mrb[0].mxu0
  %147 = vmatprep.mubr.f32.mxu0 0.0
  %148 = vmatmul.mubr.f32.gmra.mrb[0].mxu0 %v56
  %v149 = vpop.f32.mrb[0].mxu0
  %v150 = vadd.f32 %v47, %v149
  %v151 = vpop.f32.mrb[0].mxu0
  %152 = vmatprep.mubr.f32.mxu0 0.0
  %153 = vmatmul.mubr.f32.gmra.mrb[0].mxu0 %v59
  %v154 = vpop.f32.mrb[0].mxu0
  %v155 = vadd.f32 %v47, %v154
  %v156 = vpop.f32.mrb[0].mxu0
  %157 = vmatprep.mubr.f32.mxu0 0.0
  %158 = vmatmul.mubr.f32.gmra.mrb[0].mxu0 %v62
  %v159 = vpop.f32.mrb[0].mxu0
  %v160 = vadd.f32 %v47, %v159
  %v161 = vpop.f32.mrb[0].mxu0
  %162 = vmatprep.mubr.f32.mxu0 0.0
  %163 = vmatmul.mubr.f32.gmra.mrb[0].mxu0 %v65
  %v164 = vpop.f32.mrb[0].mxu0
  %v165 = vadd.f32 %v47, %v164
  %v166 = vpop.f32.mrb[0].mxu0
  %167 = vmatprep.mubr.f32.mxu0 0.0
  %168 = vmatmul.mubr.f32.gmra.mrb[0].mxu0 %v68
  %v169 = vpop.f32.mrb[0].mxu0
  %v170 = vadd.f32 %v47, %v169
  %v171 = vpop.f32.mrb[0].mxu0
  %172 = vmatprep.mubr.f32.mxu0 0.0
  %173 = vmatmul.mubr.f32.gmra.mrb[0].mxu0 %v71
  %v174 = vpop.f32.mrb[0].mxu0
  %v175 = vadd.f32 %v47, %v174
  %v176 = vpop.f32.mrb[0].mxu0
  %177 = vdwg.mxu0
  %v178 = vmax.f32 %v140, 0.0
  %v179 = vmax.f32 %v145, 0.0
  %v180 = vmax.f32 %v150, 0.0
  %v181 = vmax.f32 %v155, 0.0
  %v182 = vmax.f32 %v160, 0.0
  %v183 = vmax.f32 %v165, 0.0
  %v184 = vmax.f32 %v170, 0.0
  %v185 = vmax.f32 %v175, 0.0
  %v186 = vld [vmem:[%s3] sm:$0xff]
  %v187 = vld [vmem:[%s3 + $0x8] sm:$0xff]
  %v188 = vld [vmem:[%s3 + $0x10] sm:$0xff]
  %v189 = vld [vmem:[%s3 + $0x18] sm:$0xff]
  %v190 = vld [vmem:[%s3 + $0x20] sm:$0xff]
  %v191 = vld [vmem:[%s3 + $0x28] sm:$0xff]
  %v192 = vld [vmem:[%s3 + $0x30] sm:$0xff]
  %v193 = vld [vmem:[%s3 + $0x38] sm:$0xff]
  %v194 = vlaneseq
  %v195 = vshrl.u32 %v194, 7
  %v196 = vsub.s32 0, %v195
  %v197 = vrot.slane %v30, %v196
  %v199 = vsel %vm48, %v178, 0
  %v202 = vsel %vm48, %v179, 0
  %v205 = vsel %vm48, %v180, 0
  %v208 = vsel %vm48, %v181, 0
  %v211 = vsel %vm48, %v182, 0
  %v214 = vsel %vm48, %v183, 0
  %v217 = vsel %vm48, %v184, 0
  %v220 = vsel %vm48, %v185, 0
  %222 = vmatprep.subr.mxu0 0.0
  %223 = vmatpush1.msra.mxu0 %v186
  %224 = vmatprep.subr.mxu0 0.0
  %225 = vmatpush1.msra.mxu0 %v187
  %226 = vmatprep.subr.mxu0 0.0
  %227 = vmatpush1.msra.mxu0 %v188
  %228 = vmatprep.subr.mxu0 0.0
  %229 = vmatpush1.msra.mxu0 %v189
  %230 = vmatprep.subr.mxu0 0.0
  %231 = vmatpush1.msra.mxu0 0.0
  %232 = vmatprep.subr.mxu0 0.0
  %233 = vmatpush1.msra.mxu0 0.0
  %234 = vmatprep.subr.mxu0 0.0
  %235 = vmatpush1.msra.mxu0 0.0
  %236 = vmatprep.subr.mxu0 0.0
  %237 = vmatpush1.msra.mxu0 0.0
  %238 = vmatprep.subr.mxu0 0.0
  %239 = vmatpush1.msra.mxu0 0.0
  %240 = vmatprep.subr.mxu0 0.0
  %241 = vmatpush1.msra.mxu0 0.0
  %242 = vmatprep.subr.mxu0 0.0
  %243 = vmatpush1.msra.mxu0 0.0
  %244 = vmatprep.subr.mxu0 0.0
  %245 = vmatpush1.msra.mxu0 0.0
  %246 = vmatprep.subr.mxu0 0.0
  %247 = vmatpush1.msra.mxu0 0.0
  %248 = vmatprep.subr.mxu0 0.0
  %249 = vmatpush1.msra.mxu0 0.0
  %250 = vmatprep.subr.mxu0 0.0
  %251 = vmatpush1.msra.mxu0 0.0
  %252 = vmatprep.subr.mxu0 0.0
  %253 = vmatpush1.msra.mxu0 0.0
  %254 = vmatprep.subr.mxu0 0.0
  %255 = vmatpush1.msra.mxu0 0.0
  %256 = vmatprep.subr.mxu0 0.0
  %257 = vmatpush1.msra.mxu0 0.0
  %258 = vmatprep.subr.mxu0 0.0
  %259 = vmatpush1.msra.mxu0 0.0
  %260 = vmatprep.subr.mxu0 0.0
  %261 = vmatpush1.msra.mxu0 0.0
  %262 = vmatprep.subr.mxu0 0.0
  %263 = vmatpush1.msra.mxu0 0.0
  %264 = vmatprep.subr.mxu0 0.0
  %265 = vmatpush1.msra.mxu0 0.0
  %266 = vmatprep.subr.mxu0 0.0
  %267 = vmatpush1.msra.mxu0 0.0
  %268 = vmatprep.subr.mxu0 0.0
  %269 = vmatpush1.msra.mxu0 0.0
  %270 = vmatprep.subr.mxu0 0.0
  %271 = vmatpush1.msra.mxu0 0.0
  %272 = vmatprep.subr.mxu0 0.0
  %273 = vmatpush1.msra.mxu0 0.0
  %274 = vmatprep.subr.mxu0 0.0
  %275 = vmatpush1.msra.mxu0 0.0
  %276 = vmatprep.subr.mxu0 0.0
  %277 = vmatpush1.msra.mxu0 0.0
  %278 = vmatprep.subr.mxu0 0.0
  %279 = vmatpush1.msra.mxu0 0.0
  %280 = vmatprep.subr.mxu0 0.0
  %281 = vmatpush1.msra.mxu0 0.0
  %282 = vmatprep.subr.mxu0 0.0
  %283 = vmatpush1.msra.mxu0 0.0
  %284 = vmatprep.subr.mxu0 0.0
  %285 = vmatpush1.msra.mxu0 0.0
  %286 = vmatprep.mubr.f32.mxu0 0.0
  %287 = vmatmul.mubr.f32.gmra.mrb[0].mxu0 %v199
  %v288 = vpop.f32.mrb[0].mxu0
  %v289 = vadd.f32 %v197, %v288
  %v290 = vpop.f32.mrb[0].mxu0
  %291 = vmatprep.mubr.f32.mxu0 0.0
  %292 = vmatmul.mubr.f32.gmra.mrb[0].mxu0 %v202
  %v293 = vpop.f32.mrb[0].mxu0
  %v294 = vadd.f32 %v197, %v293
  %v295 = vpop.f32.mrb[0].mxu0
  %296 = vmatprep.mubr.f32.mxu0 0.0
  %297 = vmatmul.mubr.f32.gmra.mrb[0].mxu0 %v205
  %v298 = vpop.f32.mrb[0].mxu0
  %v299 = vadd.f32 %v197, %v298
  %v300 = vpop.f32.mrb[0].mxu0
  %301 = vmatprep.mubr.f32.mxu0 0.0
  %302 = vmatmul.mubr.f32.gmra.mrb[0].mxu0 %v208
  %v303 = vpop.f32.mrb[0].mxu0
  %v304 = vadd.f32 %v197, %v303
  %v305 = vpop.f32.mrb[0].mxu0
  %306 = vmatprep.mubr.f32.mxu0 0.0
  %307 = vmatmul.mubr.f32.gmra.mrb[0].mxu0 %v211
  %v308 = vpop.f32.mrb[0].mxu0
  %v309 = vadd.f32 %v197, %v308
  %v310 = vpop.f32.mrb[0].mxu0
  %311 = vmatprep.mubr.f32.mxu0 0.0
  %312 = vmatmul.mubr.f32.gmra.mrb[0].mxu0 %v214
  %v313 = vpop.f32.mrb[0].mxu0
  %v314 = vadd.f32 %v197, %v313
  %v315 = vpop.f32.mrb[0].mxu0
  %316 = vmatprep.mubr.f32.mxu0 0.0
  %317 = vmatmul.mubr.f32.gmra.mrb[0].mxu0 %v217
  %v318 = vpop.f32.mrb[0].mxu0
  %v319 = vadd.f32 %v197, %v318
  %v320 = vpop.f32.mrb[0].mxu0
  %321 = vmatprep.mubr.f32.mxu0 0.0
  %322 = vmatmul.mubr.f32.gmra.mrb[0].mxu0 %v220
  %v323 = vpop.f32.mrb[0].mxu0
  %v324 = vadd.f32 %v197, %v323
  %v325 = vpop.f32.mrb[0].mxu0
  %326 = vdwg.mxu0
  %v327 = vld [vmem:[%s7] sm:$0xff]
  %v328 = vld [vmem:[%s7 + $0x8] sm:$0xff]
  %v329 = vld [vmem:[%s7 + $0x10] sm:$0xff]
  %v330 = vld [vmem:[%s7 + $0x18] sm:$0xff]
  %v331 = vld [vmem:[%s7 + $0x20] sm:$0xff]
  %v332 = vld [vmem:[%s7 + $0x28] sm:$0xff]
  %v333 = vld [vmem:[%s7 + $0x30] sm:$0xff]
  %v334 = vld [vmem:[%s7 + $0x38] sm:$0xff]
  %v335 = vld [vmem:[%s6] sm:$0xff]
  %v336 = vld [vmem:[%s6 + $0x8] sm:$0xff]
  %v337 = vld [vmem:[%s6 + $0x10] sm:$0xff]
  %v338 = vld [vmem:[%s6 + $0x18] sm:$0xff]
  %v339 = vld [vmem:[%s6 + $0x20] sm:$0xff]
  %v340 = vld [vmem:[%s6 + $0x28] sm:$0xff]
  %v341 = vld [vmem:[%s6 + $0x30] sm:$0xff]
  %v342 = vld [vmem:[%s6 + $0x38] sm:$0xff]
  %v343 = vlaneseq
  %v344 = vshrl.u32 %v343, 7
  %v345 = vsub.s32 0, %v344
  %v346 = vrot.slane %v31, %v345
  %vm347 = vcmask 523264
  %v349 = vsel %vm347, %v327, 0
  %v352 = vsel %vm347, %v328, 0
  %v355 = vsel %vm347, %v329, 0
  %v358 = vsel %vm347, %v330, 0
  %v361 = vsel %vm347, %v331, 0
  %v364 = vsel %vm347, %v332, 0
  %v367 = vsel %vm347, %v333, 0
  %v370 = vsel %vm347, %v334, 0
  %372 = vmatprep.subr.mxu0 0.0
  %373 = vmatpush1.msra.mxu0 %v335
  %374 = vmatprep.subr.mxu0 0.0
  %375 = vmatpush1.msra.mxu0 %v336
  %376 = vmatprep.subr.mxu0 0.0
  %377 = vmatpush1.msra.mxu0 %v337
  %378 = vmatprep.subr.mxu0 0.0
  %379 = vmatpush1.msra.mxu0 %v338
  %380 = vmatprep.subr.mxu0 0.0
  %381 = vmatpush1.msra.mxu0 %v339
  %382 = vmatprep.subr.mxu0 0.0
  %383 = vmatpush1.msra.mxu0 %v340
  %384 = vmatprep.subr.mxu0 0.0
  %385 = vmatpush1.msra.mxu0 %v341
  %386 = vmatprep.subr.mxu0 0.0
  %387 = vmatpush1.msra.mxu0 %v342
  %388 = vmatprep.subr.mxu0 0.0
  %389 = vmatpush1.msra.mxu0 0.0
  %390 = vmatprep.subr.mxu0 0.0
  %391 = vmatpush1.msra.mxu0 0.0
  %392 = vmatprep.subr.mxu0 0.0
  %393 = vmatpush1.msra.mxu0 0.0
  %394 = vmatprep.subr.mxu0 0.0
  %395 = vmatpush1.msra.mxu0 0.0
  %396 = vmatprep.subr.mxu0 0.0
  %397 = vmatpush1.msra.mxu0 0.0
  %398 = vmatprep.subr.mxu0 0.0
  %399 = vmatpush1.msra.mxu0 0.0
  %400 = vmatprep.subr.mxu0 0.0
  %401 = vmatpush1.msra.mxu0 0.0
  %402 = vmatprep.subr.mxu0 0.0
  %403 = vmatpush1.msra.mxu0 0.0
  %404 = vmatprep.subr.mxu0 0.0
  %405 = vmatpush1.msra.mxu0 0.0
  %406 = vmatprep.subr.mxu0 0.0
  %407 = vmatpush1.msra.mxu0 0.0
  %408 = vmatprep.subr.mxu0 0.0
  %409 = vmatpush1.msra.mxu0 0.0
  %410 = vmatprep.subr.mxu0 0.0
  %411 = vmatpush1.msra.mxu0 0.0
  %412 = vmatprep.subr.mxu0 0.0
  %413 = vmatpush1.msra.mxu0 0.0
  %414 = vmatprep.subr.mxu0 0.0
  %415 = vmatpush1.msra.mxu0 0.0
  %416 = vmatprep.subr.mxu0 0.0
  %417 = vmatpush1.msra.mxu0 0.0
  %418 = vmatprep.subr.mxu0 0.0
  %419 = vmatpush1.msra.mxu0 0.0
  %420 = vmatprep.subr.mxu0 0.0
  %421 = vmatpush1.msra.mxu0 0.0
  %422 = vmatprep.subr.mxu0 0.0
  %423 = vmatpush1.msra.mxu0 0.0
  %424 = vmatprep.subr.mxu0 0.0
  %425 = vmatpush1.msra.mxu0 0.0
  %426 = vmatprep.subr.mxu0 0.0
  %427 = vmatpush1.msra.mxu0 0.0
  %428 = vmatprep.subr.mxu0 0.0
  %429 = vmatpush1.msra.mxu0 0.0
  %430 = vmatprep.subr.mxu0 0.0
  %431 = vmatpush1.msra.mxu0 0.0
  %432 = vmatprep.subr.mxu0 0.0
  %433 = vmatpush1.msra.mxu0 0.0
  %434 = vmatprep.subr.mxu0 0.0
  %435 = vmatpush1.msra.mxu0 0.0
  %436 = vmatprep.mubr.f32.mxu0 0.0
  %437 = vmatmul.mubr.f32.gmra.mrb[0].mxu0 %v349
  %v438 = vpop.f32.mrb[0].mxu0
  %v439 = vadd.f32 %v346, %v438
  %v440 = vpop.f32.mrb[0].mxu0
  %441 = vmatprep.mubr.f32.mxu0 0.0
  %442 = vmatmul.mubr.f32.gmra.mrb[0].mxu0 %v352
  %v443 = vpop.f32.mrb[0].mxu0
  %v444 = vadd.f32 %v346, %v443
  %v445 = vpop.f32.mrb[0].mxu0
  %446 = vmatprep.mubr.f32.mxu0 0.0
  %447 = vmatmul.mubr.f32.gmra.mrb[0].mxu0 %v355
  %v448 = vpop.f32.mrb[0].mxu0
  %v449 = vadd.f32 %v346, %v448
  %v450 = vpop.f32.mrb[0].mxu0
  %451 = vmatprep.mubr.f32.mxu0 0.0
  %452 = vmatmul.mubr.f32.gmra.mrb[0].mxu0 %v358
  %v453 = vpop.f32.mrb[0].mxu0
  %v454 = vadd.f32 %v346, %v453
  %v455 = vpop.f32.mrb[0].mxu0
  %456 = vmatprep.mubr.f32.mxu0 0.0
  %457 = vmatmul.mubr.f32.gmra.mrb[0].mxu0 %v361
  %v458 = vpop.f32.mrb[0].mxu0
  %v459 = vadd.f32 %v346, %v458
  %v460 = vpop.f32.mrb[0].mxu0
  %461 = vmatprep.mubr.f32.mxu0 0.0
  %462 = vmatmul.mubr.f32.gmra.mrb[0].mxu0 %v364
  %v463 = vpop.f32.mrb[0].mxu0
  %v464 = vadd.f32 %v346, %v463
  %v465 = vpop.f32.mrb[0].mxu0
  %466 = vmatprep.mubr.f32.mxu0 0.0
  %467 = vmatmul.mubr.f32.gmra.mrb[0].mxu0 %v367
  %v468 = vpop.f32.mrb[0].mxu0
  %v469 = vadd.f32 %v346, %v468
  %v470 = vpop.f32.mrb[0].mxu0
  %471 = vmatprep.mubr.f32.mxu0 0.0
  %472 = vmatmul.mubr.f32.gmra.mrb[0].mxu0 %v370
  %v473 = vpop.f32.mrb[0].mxu0
  %v474 = vadd.f32 %v346, %v473
  %v475 = vpop.f32.mrb[0].mxu0
  %476 = vdwg.mxu0
  %v477 = vld [vmem:[%s1] sm:$0xff]
  %v478 = vld [vmem:[%s1 + $0x8] sm:$0xff]
  %v479 = vld [vmem:[%s4] sm:$0xff]
  %v480 = vld [vmem:[%s4 + $0x8] sm:$0xff]
  %v481 = vld [vmem:[%s4 + $0x10] sm:$0xff]
  %v482 = vld [vmem:[%s4 + $0x18] sm:$0xff]
  %v484 = vsel %vm48, %v477, 0
  %486 = vmatprep.subr.mxu0 0.0
  %487 = vmatpush1.msra.mxu0 %v190
  %488 = vmatprep.subr.mxu0 0.0
  %489 = vmatpush1.msra.mxu0 %v191
  %490 = vmatprep.subr.mxu0 0.0
  %491 = vmatpush1.msra.mxu0 %v192
  %492 = vmatprep.subr.mxu0 0.0
  %493 = vmatpush1.msra.mxu0 %v193
  %494 = vmatprep.subr.mxu0 0.0
  %495 = vmatpush1.msra.mxu0 0.0
  %496 = vmatprep.subr.mxu0 0.0
  %497 = vmatpush1.msra.mxu0 0.0
  %498 = vmatprep.subr.mxu0 0.0
  %499 = vmatpush1.msra.mxu0 0.0
  %500 = vmatprep.subr.mxu0 0.0
  %501 = vmatpush1.msra.mxu0 0.0
  %502 = vmatprep.subr.mxu0 0.0
  %503 = vmatpush1.msra.mxu0 0.0
  %504 = vmatprep.subr.mxu0 0.0
  %505 = vmatpush1.msra.mxu0 0.0
  %506 = vmatprep.subr.mxu0 0.0
  %507 = vmatpush1.msra.mxu0 0.0
  %508 = vmatprep.subr.mxu0 0.0
  %509 = vmatpush1.msra.mxu0 0.0
  %510 = vmatprep.subr.mxu0 0.0
  %511 = vmatpush1.msra.mxu0 0.0
  %512 = vmatprep.subr.mxu0 0.0
  %513 = vmatpush1.msra.mxu0 0.0
  %514 = vmatprep.subr.mxu0 0.0
  %515 = vmatpush1.msra.mxu0 0.0
  %516 = vmatprep.subr.mxu0 0.0
  %517 = vmatpush1.msra.mxu0 0.0
  %518 = vmatprep.subr.mxu0 0.0
  %519 = vmatpush1.msra.mxu0 0.0
  %520 = vmatprep.subr.mxu0 0.0
  %521 = vmatpush1.msra.mxu0 0.0
  %522 = vmatprep.subr.mxu0 0.0
  %523 = vmatpush1.msra.mxu0 0.0
  %524 = vmatprep.subr.mxu0 0.0
  %525 = vmatpush1.msra.mxu0 0.0
  %526 = vmatprep.subr.mxu0 0.0
  %527 = vmatpush1.msra.mxu0 0.0
  %528 = vmatprep.subr.mxu0 0.0
  %529 = vmatpush1.msra.mxu0 0.0
  %530 = vmatprep.subr.mxu0 0.0
  %531 = vmatpush1.msra.mxu0 0.0
  %532 = vmatprep.subr.mxu0 0.0
  %533 = vmatpush1.msra.mxu0 0.0
  %534 = vmatprep.subr.mxu0 0.0
  %535 = vmatpush1.msra.mxu0 0.0
  %536 = vmatprep.subr.mxu0 0.0
  %537 = vmatpush1.msra.mxu0 0.0
  %538 = vmatprep.subr.mxu0 0.0
  %539 = vmatpush1.msra.mxu0 0.0
  %540 = vmatprep.subr.mxu0 0.0
  %541 = vmatpush1.msra.mxu0 0.0
  %542 = vmatprep.subr.mxu0 0.0
  %543 = vmatpush1.msra.mxu0 0.0
  %544 = vmatprep.subr.mxu0 0.0
  %545 = vmatpush1.msra.mxu0 0.0
  %546 = vmatprep.subr.mxu0 0.0
  %547 = vmatpush1.msra.mxu0 0.0
  %548 = vmatprep.subr.mxu0 0.0
  %549 = vmatpush1.msra.mxu0 0.0
  %550 = vmatprep.mubr.f32.mxu0 0.0
  %551 = vmatmul.mubr.f32.gmra.mrb[0].mxu0 %v484
  %v552 = vpop.f32.mrb[0].mxu0
  %v553 = vadd.f32 0.0, %v552
  %v554 = vpop.f32.mrb[0].mxu0
  %555 = vdwg.mxu0
  %v556 = vadd.f32 %v289, %v553
  %v557 = vxor.u32 %v556, 2147483648
  %v558 = vmul.f32 %v557, 1.442695
  %v559 = vpow.pop %v558
  %v560 = vadd.f32 %v559, 1.0
  %v561 = vrcp.pop %v560
  %v562 = vmul.f32 1.0, %v561
  %v563 = vtanh.pop %v556
  %565 = vrot.lane.b32.xlu0 %v478, 32
  %v566 = vpop.permute.xlu0 %565
  %v568 = vmul.f32 %v562, %v566
  %570 = vrot.lane.b32.xlu0 %v563, 64
  %v571 = vpop.permute.xlu0 %570
  %v573 = vmul.f32 %v562, %v571
  %575 = vrot.lane.b32.xlu0 %v573, 32
  %v576 = vpop.permute.xlu0 %575
  %v578 = vadd.f32 %v568, %v576
  %v579 = vtanh.pop %v578
  %581 = vrot.lane.b32.xlu0 %v579, 64
  %v582 = vpop.permute.xlu0 %581
  %v584 = vmul.f32 %v562, %v582
  %586 = vrot.lane.b32.xlu0 %v584, 32
  %v587 = vpop.permute.xlu0 %586
  %v588 = vsel %vm48, %v587, 0
  %590 = vmatprep.subr.mxu0 0.0
  %591 = vmatpush1.msra.mxu0 %v479
  %592 = vmatprep.subr.mxu0 0.0
  %593 = vmatpush1.msra.mxu0 %v480
  %594 = vmatprep.subr.mxu0 0.0
  %595 = vmatpush1.msra.mxu0 %v481
  %596 = vmatprep.subr.mxu0 0.0
  %597 = vmatpush1.msra.mxu0 %v482
  %598 = vmatprep.subr.mxu0 0.0
  %599 = vmatpush1.msra.mxu0 0.0
  %600 = vmatprep.subr.mxu0 0.0
  %601 = vmatpush1.msra.mxu0 0.0
  %602 = vmatprep.subr.mxu0 0.0
  %603 = vmatpush1.msra.mxu0 0.0
  %604 = vmatprep.subr.mxu0 0.0
  %605 = vmatpush1.msra.mxu0 0.0
  %606 = vmatprep.subr.mxu0 0.0
  %607 = vmatpush1.msra.mxu0 0.0
  %608 = vmatprep.subr.mxu0 0.0
  %609 = vmatpush1.msra.mxu0 0.0
  %610 = vmatprep.subr.mxu0 0.0
  %611 = vmatpush1.msra.mxu0 0.0
  %612 = vmatprep.subr.mxu0 0.0
  %613 = vmatpush1.msra.mxu0 0.0
  %614 = vmatprep.subr.mxu0 0.0
  %615 = vmatpush1.msra.mxu0 0.0
  %616 = vmatprep.subr.mxu0 0.0
  %617 = vmatpush1.msra.mxu0 0.0
  %618 = vmatprep.subr.mxu0 0.0
  %619 = vmatpush1.msra.mxu0 0.0
  %620 = vmatprep.subr.mxu0 0.0
  %621 = vmatpush1.msra.mxu0 0.0
  %622 = vmatprep.subr.mxu0 0.0
  %623 = vmatpush1.msra.mxu0 0.0
  %624 = vmatprep.subr.mxu0 0.0
  %625 = vmatpush1.msra.mxu0 0.0
  %626 = vmatprep.subr.mxu0 0.0
  %627 = vmatpush1.msra.mxu0 0.0
  %628 = vmatprep.subr.mxu0 0.0
  %629 = vmatpush1.msra.mxu0 0.0
  %630 = vmatprep.subr.mxu0 0.0
  %631 = vmatpush1.msra.mxu0 0.0
  %632 = vmatprep.subr.mxu0 0.0
  %633 = vmatpush1.msra.mxu0 0.0
  %634 = vmatprep.subr.mxu0 0.0
  %635 = vmatpush1.msra.mxu0 0.0
  %636 = vmatprep.subr.mxu0 0.0
  %637 = vmatpush1.msra.mxu0 0.0
  %638 = vmatprep.subr.mxu0 0.0
  %639 = vmatpush1.msra.mxu0 0.0
  %640 = vmatprep.subr.mxu0 0.0
  %641 = vmatpush1.msra.mxu0 0.0
  %642 = vmatprep.subr.mxu0 0.0
  %643 = vmatpush1.msra.mxu0 0.0
  %644 = vmatprep.subr.mxu0 0.0
  %645 = vmatpush1.msra.mxu0 0.0
  %646 = vmatprep.subr.mxu0 0.0
  %647 = vmatpush1.msra.mxu0 0.0
  %648 = vmatprep.subr.mxu0 0.0
  %649 = vmatpush1.msra.mxu0 0.0
  %650 = vmatprep.subr.mxu0 0.0
  %651 = vmatpush1.msra.mxu0 0.0
  %652 = vmatprep.subr.mxu0 0.0
  %653 = vmatpush1.msra.mxu0 0.0
  %654 = vmatprep.mubr.f32.mxu0 0.0
  %655 = vmatmul.mubr.f32.gmra.mrb[0].mxu0 %v588
  %v656 = vpop.f32.mrb[0].mxu0
  %v657 = vadd.f32 %v439, %v656
  %v658 = vpop.f32.mrb[0].mxu0
  %659 = vdwg.mxu0
  %660 = vst [vmem:[%s8] sm:$0xff] %v657
  %661 = vmatprep.subr.mxu0 0.0
  %662 = vmatpush1.msra.mxu0 %v190
  %663 = vmatprep.subr.mxu0 0.0
  %664 = vmatpush1.msra.mxu0 %v191
  %665 = vmatprep.subr.mxu0 0.0
  %666 = vmatpush1.msra.mxu0 %v192
  %667 = vmatprep.subr.mxu0 0.0
  %668 = vmatpush1.msra.mxu0 %v193
  %669 = vmatprep.subr.mxu0 0.0
  %670 = vmatpush1.msra.mxu0 0.0
  %671 = vmatprep.subr.mxu0 0.0
  %672 = vmatpush1.msra.mxu0 0.0
  %673 = vmatprep.subr.mxu0 0.0
  %674 = vmatpush1.msra.mxu0 0.0
  %675 = vmatprep.subr.mxu0 0.0
  %676 = vmatpush1.msra.mxu0 0.0
  %677 = vmatprep.subr.mxu0 0.0
  %678 = vmatpush1.msra.mxu0 0.0
  %679 = vmatprep.subr.mxu0 0.0
  %680 = vmatpush1.msra.mxu0 0.0
  %681 = vmatprep.subr.mxu0 0.0
  %682 = vmatpush1.msra.mxu0 0.0
  %683 = vmatprep.subr.mxu0 0.0
  %684 = vmatpush1.msra.mxu0 0.0
  %685 = vmatprep.subr.mxu0 0.0
  %686 = vmatpush1.msra.mxu0 0.0
  %687 = vmatprep.subr.mxu0 0.0
  %688 = vmatpush1.msra.mxu0 0.0
  %689 = vmatprep.subr.mxu0 0.0
  %690 = vmatpush1.msra.mxu0 0.0
  %691 = vmatprep.subr.mxu0 0.0
  %692 = vmatpush1.msra.mxu0 0.0
  %693 = vmatprep.subr.mxu0 0.0
  %694 = vmatpush1.msra.mxu0 0.0
  %695 = vmatprep.subr.mxu0 0.0
  %696 = vmatpush1.msra.mxu0 0.0
  %697 = vmatprep.subr.mxu0 0.0
  %698 = vmatpush1.msra.mxu0 0.0
  %699 = vmatprep.subr.mxu0 0.0
  %700 = vmatpush1.msra.mxu0 0.0
  %701 = vmatprep.subr.mxu0 0.0
  %702 = vmatpush1.msra.mxu0 0.0
  %703 = vmatprep.subr.mxu0 0.0
  %704 = vmatpush1.msra.mxu0 0.0
  %705 = vmatprep.subr.mxu0 0.0
  %706 = vmatpush1.msra.mxu0 0.0
  %707 = vmatprep.subr.mxu0 0.0
  %708 = vmatpush1.msra.mxu0 0.0
  %709 = vmatprep.subr.mxu0 0.0
  %710 = vmatpush1.msra.mxu0 0.0
  %711 = vmatprep.subr.mxu0 0.0
  %712 = vmatpush1.msra.mxu0 0.0
  %713 = vmatprep.subr.mxu0 0.0
  %714 = vmatpush1.msra.mxu0 0.0
  %715 = vmatprep.subr.mxu0 0.0
  %716 = vmatpush1.msra.mxu0 0.0
  %717 = vmatprep.subr.mxu0 0.0
  %718 = vmatpush1.msra.mxu0 0.0
  %719 = vmatprep.subr.mxu0 0.0
  %720 = vmatpush1.msra.mxu0 0.0
  %721 = vmatprep.subr.mxu0 0.0
  %722 = vmatpush1.msra.mxu0 0.0
  %723 = vmatprep.subr.mxu0 0.0
  %724 = vmatpush1.msra.mxu0 0.0
  %725 = vmatprep.mubr.f32.mxu0 0.0
  %726 = vmatmul.mubr.f32.gmra.mrb[0].mxu0 %v588
  %v727 = vpop.f32.mrb[0].mxu0
  %v728 = vadd.f32 0.0, %v727
  %v729 = vpop.f32.mrb[0].mxu0
  %730 = vdwg.mxu0
  %v731 = vadd.f32 %v294, %v728
  %v732 = vxor.u32 %v731, 2147483648
  %v733 = vmul.f32 %v732, 1.442695
  %v734 = vpow.pop %v733
  %v735 = vadd.f32 %v734, 1.0
  %v736 = vrcp.pop %v735
  %v737 = vmul.f32 1.0, %v736
  %v738 = vtanh.pop %v731
  %v739 = vmul.f32 %v737, %v578
  %741 = vrot.lane.b32.xlu0 %v738, 64
  %v742 = vpop.permute.xlu0 %741
  %v744 = vmul.f32 %v737, %v742
  %746 = vrot.lane.b32.xlu0 %v744, 32
  %v747 = vpop.permute.xlu0 %746
  %v749 = vadd.f32 %v739, %v747
  %v750 = vtanh.pop %v749
  %752 = vrot.lane.b32.xlu0 %v750, 64
  %v753 = vpop.permute.xlu0 %752
  %v755 = vmul.f32 %v737, %v753
  %757 = vrot.lane.b32.xlu0 %v755, 32
  %v758 = vpop.permute.xlu0 %757
  %v759 = vsel %vm48, %v758, 0
  %761 = vmatprep.subr.mxu0 0.0
  %762 = vmatpush1.msra.mxu0 %v479
  %763 = vmatprep.subr.mxu0 0.0
  %764 = vmatpush1.msra.mxu0 %v480
  %765 = vmatprep.subr.mxu0 0.0
  %766 = vmatpush1.msra.mxu0 %v481
  %767 = vmatprep.subr.mxu0 0.0
  %768 = vmatpush1.msra.mxu0 %v482
  %769 = vmatprep.subr.mxu0 0.0
  %770 = vmatpush1.msra.mxu0 0.0
  %771 = vmatprep.subr.mxu0 0.0
  %772 = vmatpush1.msra.mxu0 0.0
  %773 = vmatprep.subr.mxu0 0.0
  %774 = vmatpush1.msra.mxu0 0.0
  %775 = vmatprep.subr.mxu0 0.0
  %776 = vmatpush1.msra.mxu0 0.0
  %777 = vmatprep.subr.mxu0 0.0
  %778 = vmatpush1.msra.mxu0 0.0
  %779 = vmatprep.subr.mxu0 0.0
  %780 = vmatpush1.msra.mxu0 0.0
  %781 = vmatprep.subr.mxu0 0.0
  %782 = vmatpush1.msra.mxu0 0.0
  %783 = vmatprep.subr.mxu0 0.0
  %784 = vmatpush1.msra.mxu0 0.0
  %785 = vmatprep.subr.mxu0 0.0
  %786 = vmatpush1.msra.mxu0 0.0
  %787 = vmatprep.subr.mxu0 0.0
  %788 = vmatpush1.msra.mxu0 0.0
  %789 = vmatprep.subr.mxu0 0.0
  %790 = vmatpush1.msra.mxu0 0.0
  %791 = vmatprep.subr.mxu0 0.0
  %792 = vmatpush1.msra.mxu0 0.0
  %793 = vmatprep.subr.mxu0 0.0
  %794 = vmatpush1.msra.mxu0 0.0
  %795 = vmatprep.subr.mxu0 0.0
  %796 = vmatpush1.msra.mxu0 0.0
  %797 = vmatprep.subr.mxu0 0.0
  %798 = vmatpush1.msra.mxu0 0.0
  %799 = vmatprep.subr.mxu0 0.0
  %800 = vmatpush1.msra.mxu0 0.0
  %801 = vmatprep.subr.mxu0 0.0
  %802 = vmatpush1.msra.mxu0 0.0
  %803 = vmatprep.subr.mxu0 0.0
  %804 = vmatpush1.msra.mxu0 0.0
  %805 = vmatprep.subr.mxu0 0.0
  %806 = vmatpush1.msra.mxu0 0.0
  %807 = vmatprep.subr.mxu0 0.0
  %808 = vmatpush1.msra.mxu0 0.0
  %809 = vmatprep.subr.mxu0 0.0
  %810 = vmatpush1.msra.mxu0 0.0
  %811 = vmatprep.subr.mxu0 0.0
  %812 = vmatpush1.msra.mxu0 0.0
  %813 = vmatprep.subr.mxu0 0.0
  %814 = vmatpush1.msra.mxu0 0.0
  %815 = vmatprep.subr.mxu0 0.0
  %816 = vmatpush1.msra.mxu0 0.0
  %817 = vmatprep.subr.mxu0 0.0
  %818 = vmatpush1.msra.mxu0 0.0
  %819 = vmatprep.subr.mxu0 0.0
  %820 = vmatpush1.msra.mxu0 0.0
  %821 = vmatprep.subr.mxu0 0.0
  %822 = vmatpush1.msra.mxu0 0.0
  %823 = vmatprep.subr.mxu0 0.0
  %824 = vmatpush1.msra.mxu0 0.0
  %825 = vmatprep.mubr.f32.mxu0 0.0
  %826 = vmatmul.mubr.f32.gmra.mrb[0].mxu0 %v759
  %v827 = vpop.f32.mrb[0].mxu0
  %v828 = vadd.f32 %v444, %v827
  %v829 = vpop.f32.mrb[0].mxu0
  %830 = vdwg.mxu0
  %831 = vst [vmem:[%s8 + $0x8] sm:$0xff] %v828
  %832 = vmatprep.subr.mxu0 0.0
  %833 = vmatpush1.msra.mxu0 %v190
  %834 = vmatprep.subr.mxu0 0.0
  %835 = vmatpush1.msra.mxu0 %v191
  %836 = vmatprep.subr.mxu0 0.0
  %837 = vmatpush1.msra.mxu0 %v192
  %838 = vmatprep.subr.mxu0 0.0
  %839 = vmatpush1.msra.mxu0 %v193
  %840 = vmatprep.subr.mxu0 0.0
  %841 = vmatpush1.msra.mxu0 0.0
  %842 = vmatprep.subr.mxu0 0.0
  %843 = vmatpush1.msra.mxu0 0.0
  %844 = vmatprep.subr.mxu0 0.0
  %845 = vmatpush1.msra.mxu0 0.0
  %846 = vmatprep.subr.mxu0 0.0
  %847 = vmatpush1.msra.mxu0 0.0
  %848 = vmatprep.subr.mxu0 0.0
  %849 = vmatpush1.msra.mxu0 0.0
  %850 = vmatprep.subr.mxu0 0.0
  %851 = vmatpush1.msra.mxu0 0.0
  %852 = vmatprep.subr.mxu0 0.0
  %853 = vmatpush1.msra.mxu0 0.0
  %854 = vmatprep.subr.mxu0 0.0
  %855 = vmatpush1.msra.mxu0 0.0
  %856 = vmatprep.subr.mxu0 0.0
  %857 = vmatpush1.msra.mxu0 0.0
  %858 = vmatprep.subr.mxu0 0.0
  %859 = vmatpush1.msra.mxu0 0.0
  %860 = vmatprep.subr.mxu0 0.0
  %861 = vmatpush1.msra.mxu0 0.0
  %862 = vmatprep.subr.mxu0 0.0
  %863 = vmatpush1.msra.mxu0 0.0
  %864 = vmatprep.subr.mxu0 0.0
  %865 = vmatpush1.msra.mxu0 0.0
  %866 = vmatprep.subr.mxu0 0.0
  %867 = vmatpush1.msra.mxu0 0.0
  %868 = vmatprep.subr.mxu0 0.0
  %869 = vmatpush1.msra.mxu0 0.0
  %870 = vmatprep.subr.mxu0 0.0
  %871 = vmatpush1.msra.mxu0 0.0
  %872 = vmatprep.subr.mxu0 0.0
  %873 = vmatpush1.msra.mxu0 0.0
  %874 = vmatprep.subr.mxu0 0.0
  %875 = vmatpush1.msra.mxu0 0.0
  %876 = vmatprep.subr.mxu0 0.0
  %877 = vmatpush1.msra.mxu0 0.0
  %878 = vmatprep.subr.mxu0 0.0
  %879 = vmatpush1.msra.mxu0 0.0
  %880 = vmatprep.subr.mxu0 0.0
  %881 = vmatpush1.msra.mxu0 0.0
  %882 = vmatprep.subr.mxu0 0.0
  %883 = vmatpush1.msra.mxu0 0.0
  %884 = vmatprep.subr.mxu0 0.0
  %885 = vmatpush1.msra.mxu0 0.0
  %886 = vmatprep.subr.mxu0 0.0
  %887 = vmatpush1.msra.mxu0 0.0
  %888 = vmatprep.subr.mxu0 0.0
  %889 = vmatpush1.msra.mxu0 0.0
  %890 = vmatprep.subr.mxu0 0.0
  %891 = vmatpush1.msra.mxu0 0.0
  %892 = vmatprep.subr.mxu0 0.0
  %893 = vmatpush1.msra.mxu0 0.0
  %894 = vmatprep.subr.mxu0 0.0
  %895 = vmatpush1.msra.mxu0 0.0
  %896 = vmatprep.mubr.f32.mxu0 0.0
  %897 = vmatmul.mubr.f32.gmra.mrb[0].mxu0 %v759
  %v898 = vpop.f32.mrb[0].mxu0
  %v899 = vadd.f32 0.0, %v898
  %v900 = vpop.f32.mrb[0].mxu0
  %901 = vdwg.mxu0
  %v902 = vadd.f32 %v299, %v899
  %v903 = vxor.u32 %v902, 2147483648
  %v904 = vmul.f32 %v903, 1.442695
  %v905 = vpow.pop %v904
  %v906 = vadd.f32 %v905, 1.0
  %v907 = vrcp.pop %v906
  %v908 = vmul.f32 1.0, %v907
  %v909 = vtanh.pop %v902
  %v910 = vmul.f32 %v908, %v749
  %912 = vrot.lane.b32.xlu0 %v909, 64
  %v913 = vpop.permute.xlu0 %912
  %v915 = vmul.f32 %v908, %v913
  %917 = vrot.lane.b32.xlu0 %v915, 32
  %v918 = vpop.permute.xlu0 %917
  %v920 = vadd.f32 %v910, %v918
  %v921 = vtanh.pop %v920
  %923 = vrot.lane.b32.xlu0 %v921, 64
  %v924 = vpop.permute.xlu0 %923
  %v926 = vmul.f32 %v908, %v924
  %928 = vrot.lane.b32.xlu0 %v926, 32
  %v929 = vpop.permute.xlu0 %928
  %v930 = vsel %vm48, %v929, 0
  %932 = vmatprep.subr.mxu0 0.0
  %933 = vmatpush1.msra.mxu0 %v479
  %934 = vmatprep.subr.mxu0 0.0
  %935 = vmatpush1.msra.mxu0 %v480
  %936 = vmatprep.subr.mxu0 0.0
  %937 = vmatpush1.msra.mxu0 %v481
  %938 = vmatprep.subr.mxu0 0.0
  %939 = vmatpush1.msra.mxu0 %v482
  %940 = vmatprep.subr.mxu0 0.0
  %941 = vmatpush1.msra.mxu0 0.0
  %942 = vmatprep.subr.mxu0 0.0
  %943 = vmatpush1.msra.mxu0 0.0
  %944 = vmatprep.subr.mxu0 0.0
  %945 = vmatpush1.msra.mxu0 0.0
  %946 = vmatprep.subr.mxu0 0.0
  %947 = vmatpush1.msra.mxu0 0.0
  %948 = vmatprep.subr.mxu0 0.0
  %949 = vmatpush1.msra.mxu0 0.0
  %950 = vmatprep.subr.mxu0 0.0
  %951 = vmatpush1.msra.mxu0 0.0
  %952 = vmatprep.subr.mxu0 0.0
  %953 = vmatpush1.msra.mxu0 0.0
  %954 = vmatprep.subr.mxu0 0.0
  %955 = vmatpush1.msra.mxu0 0.0
  %956 = vmatprep.subr.mxu0 0.0
  %957 = vmatpush1.msra.mxu0 0.0
  %958 = vmatprep.subr.mxu0 0.0
  %959 = vmatpush1.msra.mxu0 0.0
  %960 = vmatprep.subr.mxu0 0.0
  %961 = vmatpush1.msra.mxu0 0.0
  %962 = vmatprep.subr.mxu0 0.0
  %963 = vmatpush1.msra.mxu0 0.0
  %964 = vmatprep.subr.mxu0 0.0
  %965 = vmatpush1.msra.mxu0 0.0
  %966 = vmatprep.subr.mxu0 0.0
  %967 = vmatpush1.msra.mxu0 0.0
  %968 = vmatprep.subr.mxu0 0.0
  %969 = vmatpush1.msra.mxu0 0.0
  %970 = vmatprep.subr.mxu0 0.0
  %971 = vmatpush1.msra.mxu0 0.0
  %972 = vmatprep.subr.mxu0 0.0
  %973 = vmatpush1.msra.mxu0 0.0
  %974 = vmatprep.subr.mxu0 0.0
  %975 = vmatpush1.msra.mxu0 0.0
  %976 = vmatprep.subr.mxu0 0.0
  %977 = vmatpush1.msra.mxu0 0.0
  %978 = vmatprep.subr.mxu0 0.0
  %979 = vmatpush1.msra.mxu0 0.0
  %980 = vmatprep.subr.mxu0 0.0
  %981 = vmatpush1.msra.mxu0 0.0
  %982 = vmatprep.subr.mxu0 0.0
  %983 = vmatpush1.msra.mxu0 0.0
  %984 = vmatprep.subr.mxu0 0.0
  %985 = vmatpush1.msra.mxu0 0.0
  %986 = vmatprep.subr.mxu0 0.0
  %987 = vmatpush1.msra.mxu0 0.0
  %988 = vmatprep.subr.mxu0 0.0
  %989 = vmatpush1.msra.mxu0 0.0
  %990 = vmatprep.subr.mxu0 0.0
  %991 = vmatpush1.msra.mxu0 0.0
  %992 = vmatprep.subr.mxu0 0.0
  %993 = vmatpush1.msra.mxu0 0.0
  %994 = vmatprep.subr.mxu0 0.0
  %995 = vmatpush1.msra.mxu0 0.0
  %996 = vmatprep.mubr.f32.mxu0 0.0
  %997 = vmatmul.mubr.f32.gmra.mrb[0].mxu0 %v930
  %v998 = vpop.f32.mrb[0].mxu0
  %v999 = vadd.f32 %v449, %v998
  %v1000 = vpop.f32.mrb[0].mxu0
  %1001 = vdwg.mxu0
  %1002 = vst [vmem:[%s8 + $0x10] sm:$0xff] %v999
  %1003 = vmatprep.subr.mxu0 0.0
  %1004 = vmatpush1.msra.mxu0 %v190
  %1005 = vmatprep.subr.mxu0 0.0
  %1006 = vmatpush1.msra.mxu0 %v191
  %1007 = vmatprep.subr.mxu0 0.0
  %1008 = vmatpush1.msra.mxu0 %v192
  %1009 = vmatprep.subr.mxu0 0.0
  %1010 = vmatpush1.msra.mxu0 %v193
  %1011 = vmatprep.subr.mxu0 0.0
  %1012 = vmatpush1.msra.mxu0 0.0
  %1013 = vmatprep.subr.mxu0 0.0
  %1014 = vmatpush1.msra.mxu0 0.0
  %1015 = vmatprep.subr.mxu0 0.0
  %1016 = vmatpush1.msra.mxu0 0.0
  %1017 = vmatprep.subr.mxu0 0.0
  %1018 = vmatpush1.msra.mxu0 0.0
  %1019 = vmatprep.subr.mxu0 0.0
  %1020 = vmatpush1.msra.mxu0 0.0
  %1021 = vmatprep.subr.mxu0 0.0
  %1022 = vmatpush1.msra.mxu0 0.0
  %1023 = vmatprep.subr.mxu0 0.0
  %1024 = vmatpush1.msra.mxu0 0.0
  %1025 = vmatprep.subr.mxu0 0.0
  %1026 = vmatpush1.msra.mxu0 0.0
  %1027 = vmatprep.subr.mxu0 0.0
  %1028 = vmatpush1.msra.mxu0 0.0
  %1029 = vmatprep.subr.mxu0 0.0
  %1030 = vmatpush1.msra.mxu0 0.0
  %1031 = vmatprep.subr.mxu0 0.0
  %1032 = vmatpush1.msra.mxu0 0.0
  %1033 = vmatprep.subr.mxu0 0.0
  %1034 = vmatpush1.msra.mxu0 0.0
  %1035 = vmatprep.subr.mxu0 0.0
  %1036 = vmatpush1.msra.mxu0 0.0
  %1037 = vmatprep.subr.mxu0 0.0
  %1038 = vmatpush1.msra.mxu0 0.0
  %1039 = vmatprep.subr.mxu0 0.0
  %1040 = vmatpush1.msra.mxu0 0.0
  %1041 = vmatprep.subr.mxu0 0.0
  %1042 = vmatpush1.msra.mxu0 0.0
  %1043 = vmatprep.subr.mxu0 0.0
  %1044 = vmatpush1.msra.mxu0 0.0
  %1045 = vmatprep.subr.mxu0 0.0
  %1046 = vmatpush1.msra.mxu0 0.0
  %1047 = vmatprep.subr.mxu0 0.0
  %1048 = vmatpush1.msra.mxu0 0.0
  %1049 = vmatprep.subr.mxu0 0.0
  %1050 = vmatpush1.msra.mxu0 0.0
  %1051 = vmatprep.subr.mxu0 0.0
  %1052 = vmatpush1.msra.mxu0 0.0
  %1053 = vmatprep.subr.mxu0 0.0
  %1054 = vmatpush1.msra.mxu0 0.0
  %1055 = vmatprep.subr.mxu0 0.0
  %1056 = vmatpush1.msra.mxu0 0.0
  %1057 = vmatprep.subr.mxu0 0.0
  %1058 = vmatpush1.msra.mxu0 0.0
  %1059 = vmatprep.subr.mxu0 0.0
  %1060 = vmatpush1.msra.mxu0 0.0
  %1061 = vmatprep.subr.mxu0 0.0
  %1062 = vmatpush1.msra.mxu0 0.0
  %1063 = vmatprep.subr.mxu0 0.0
  %1064 = vmatpush1.msra.mxu0 0.0
  %1065 = vmatprep.subr.mxu0 0.0
  %1066 = vmatpush1.msra.mxu0 0.0
  %1067 = vmatprep.mubr.f32.mxu0 0.0
  %1068 = vmatmul.mubr.f32.gmra.mrb[0].mxu0 %v930
  %v1069 = vpop.f32.mrb[0].mxu0
  %v1070 = vadd.f32 0.0, %v1069
  %v1071 = vpop.f32.mrb[0].mxu0
  %1072 = vdwg.mxu0
  %v1073 = vadd.f32 %v304, %v1070
  %v1074 = vxor.u32 %v1073, 2147483648
  %v1075 = vmul.f32 %v1074, 1.442695
  %v1076 = vpow.pop %v1075
  %v1077 = vadd.f32 %v1076, 1.0
  %v1078 = vrcp.pop %v1077
  %v1079 = vmul.f32 1.0, %v1078
  %v1080 = vtanh.pop %v1073
  %v1081 = vmul.f32 %v1079, %v920
  %1083 = vrot.lane.b32.xlu0 %v1080, 64
  %v1084 = vpop.permute.xlu0 %1083
  %v1086 = vmul.f32 %v1079, %v1084
  %1088 = vrot.lane.b32.xlu0 %v1086, 32
  %v1089 = vpop.permute.xlu0 %1088
  %v1091 = vadd.f32 %v1081, %v1089
  %v1092 = vtanh.pop %v1091
  %1094 = vrot.lane.b32.xlu0 %v1092, 64
  %v1095 = vpop.permute.xlu0 %1094
  %v1097 = vmul.f32 %v1079, %v1095
  %1099 = vrot.lane.b32.xlu0 %v1097, 32
  %v1100 = vpop.permute.xlu0 %1099
  %v1101 = vsel %vm48, %v1100, 0
  %1103 = vmatprep.subr.mxu0 0.0
  %1104 = vmatpush1.msra.mxu0 %v479
  %1105 = vmatprep.subr.mxu0 0.0
  %1106 = vmatpush1.msra.mxu0 %v480
  %1107 = vmatprep.subr.mxu0 0.0
  %1108 = vmatpush1.msra.mxu0 %v481
  %1109 = vmatprep.subr.mxu0 0.0
  %1110 = vmatpush1.msra.mxu0 %v482
  %1111 = vmatprep.subr.mxu0 0.0
  %1112 = vmatpush1.msra.mxu0 0.0
  %1113 = vmatprep.subr.mxu0 0.0
  %1114 = vmatpush1.msra.mxu0 0.0
  %1115 = vmatprep.subr.mxu0 0.0
  %1116 = vmatpush1.msra.mxu0 0.0
  %1117 = vmatprep.subr.mxu0 0.0
  %1118 = vmatpush1.msra.mxu0 0.0
  %1119 = vmatprep.subr.mxu0 0.0
  %1120 = vmatpush1.msra.mxu0 0.0
  %1121 = vmatprep.subr.mxu0 0.0
  %1122 = vmatpush1.msra.mxu0 0.0
  %1123 = vmatprep.subr.mxu0 0.0
  %1124 = vmatpush1.msra.mxu0 0.0
  %1125 = vmatprep.subr.mxu0 0.0
  %1126 = vmatpush1.msra.mxu0 0.0
  %1127 = vmatprep.subr.mxu0 0.0
  %1128 = vmatpush1.msra.mxu0 0.0
  %1129 = vmatprep.subr.mxu0 0.0
  %1130 = vmatpush1.msra.mxu0 0.0
  %1131 = vmatprep.subr.mxu0 0.0
  %1132 = vmatpush1.msra.mxu0 0.0
  %1133 = vmatprep.subr.mxu0 0.0
  %1134 = vmatpush1.msra.mxu0 0.0
  %1135 = vmatprep.subr.mxu0 0.0
  %1136 = vmatpush1.msra.mxu0 0.0
  %1137 = vmatprep.subr.mxu0 0.0
  %1138 = vmatpush1.msra.mxu0 0.0
  %1139 = vmatprep.subr.mxu0 0.0
  %1140 = vmatpush1.msra.mxu0 0.0
  %1141 = vmatprep.subr.mxu0 0.0
  %1142 = vmatpush1.msra.mxu0 0.0
  %1143 = vmatprep.subr.mxu0 0.0
  %1144 = vmatpush1.msra.mxu0 0.0
  %1145 = vmatprep.subr.mxu0 0.0
  %1146 = vmatpush1.msra.mxu0 0.0
  %1147 = vmatprep.subr.mxu0 0.0
  %1148 = vmatpush1.msra.mxu0 0.0
  %1149 = vmatprep.subr.mxu0 0.0
  %1150 = vmatpush1.msra.mxu0 0.0
  %1151 = vmatprep.subr.mxu0 0.0
  %1152 = vmatpush1.msra.mxu0 0.0
  %1153 = vmatprep.subr.mxu0 0.0
  %1154 = vmatpush1.msra.mxu0 0.0
  %1155 = vmatprep.subr.mxu0 0.0
  %1156 = vmatpush1.msra.mxu0 0.0
  %1157 = vmatprep.subr.mxu0 0.0
  %1158 = vmatpush1.msra.mxu0 0.0
  %1159 = vmatprep.subr.mxu0 0.0
  %1160 = vmatpush1.msra.mxu0 0.0
  %1161 = vmatprep.subr.mxu0 0.0
  %1162 = vmatpush1.msra.mxu0 0.0
  %1163 = vmatprep.subr.mxu0 0.0
  %1164 = vmatpush1.msra.mxu0 0.0
  %1165 = vmatprep.subr.mxu0 0.0
  %1166 = vmatpush1.msra.mxu0 0.0
  %1167 = vmatprep.mubr.f32.mxu0 0.0
  %1168 = vmatmul.mubr.f32.gmra.mrb[0].mxu0 %v1101
  %v1169 = vpop.f32.mrb[0].mxu0
  %v1170 = vadd.f32 %v454, %v1169
  %v1171 = vpop.f32.mrb[0].mxu0
  %1172 = vdwg.mxu0
  %1173 = vst [vmem:[%s8 + $0x18] sm:$0xff] %v1170
  %1174 = vmatprep.subr.mxu0 0.0
  %1175 = vmatpush1.msra.mxu0 %v190
  %1176 = vmatprep.subr.mxu0 0.0
  %1177 = vmatpush1.msra.mxu0 %v191
  %1178 = vmatprep.subr.mxu0 0.0
  %1179 = vmatpush1.msra.mxu0 %v192
  %1180 = vmatprep.subr.mxu0 0.0
  %1181 = vmatpush1.msra.mxu0 %v193
  %1182 = vmatprep.subr.mxu0 0.0
  %1183 = vmatpush1.msra.mxu0 0.0
  %1184 = vmatprep.subr.mxu0 0.0
  %1185 = vmatpush1.msra.mxu0 0.0
  %1186 = vmatprep.subr.mxu0 0.0
  %1187 = vmatpush1.msra.mxu0 0.0
  %1188 = vmatprep.subr.mxu0 0.0
  %1189 = vmatpush1.msra.mxu0 0.0
  %1190 = vmatprep.subr.mxu0 0.0
  %1191 = vmatpush1.msra.mxu0 0.0
  %1192 = vmatprep.subr.mxu0 0.0
  %1193 = vmatpush1.msra.mxu0 0.0
  %1194 = vmatprep.subr.mxu0 0.0
  %1195 = vmatpush1.msra.mxu0 0.0
  %1196 = vmatprep.subr.mxu0 0.0
  %1197 = vmatpush1.msra.mxu0 0.0
  %1198 = vmatprep.subr.mxu0 0.0
  %1199 = vmatpush1.msra.mxu0 0.0
  %1200 = vmatprep.subr.mxu0 0.0
  %1201 = vmatpush1.msra.mxu0 0.0
  %1202 = vmatprep.subr.mxu0 0.0
  %1203 = vmatpush1.msra.mxu0 0.0
  %1204 = vmatprep.subr.mxu0 0.0
  %1205 = vmatpush1.msra.mxu0 0.0
  %1206 = vmatprep.subr.mxu0 0.0
  %1207 = vmatpush1.msra.mxu0 0.0
  %1208 = vmatprep.subr.mxu0 0.0
  %1209 = vmatpush1.msra.mxu0 0.0
  %1210 = vmatprep.subr.mxu0 0.0
  %1211 = vmatpush1.msra.mxu0 0.0
  %1212 = vmatprep.subr.mxu0 0.0
  %1213 = vmatpush1.msra.mxu0 0.0
  %1214 = vmatprep.subr.mxu0 0.0
  %1215 = vmatpush1.msra.mxu0 0.0
  %1216 = vmatprep.subr.mxu0 0.0
  %1217 = vmatpush1.msra.mxu0 0.0
  %1218 = vmatprep.subr.mxu0 0.0
  %1219 = vmatpush1.msra.mxu0 0.0
  %1220 = vmatprep.subr.mxu0 0.0
  %1221 = vmatpush1.msra.mxu0 0.0
  %1222 = vmatprep.subr.mxu0 0.0
  %1223 = vmatpush1.msra.mxu0 0.0
  %1224 = vmatprep.subr.mxu0 0.0
  %1225 = vmatpush1.msra.mxu0 0.0
  %1226 = vmatprep.subr.mxu0 0.0
  %1227 = vmatpush1.msra.mxu0 0.0
  %1228 = vmatprep.subr.mxu0 0.0
  %1229 = vmatpush1.msra.mxu0 0.0
  %1230 = vmatprep.subr.mxu0 0.0
  %1231 = vmatpush1.msra.mxu0 0.0
  %1232 = vmatprep.subr.mxu0 0.0
  %1233 = vmatpush1.msra.mxu0 0.0
  %1234 = vmatprep.subr.mxu0 0.0
  %1235 = vmatpush1.msra.mxu0 0.0
  %1236 = vmatprep.subr.mxu0 0.0
  %1237 = vmatpush1.msra.mxu0 0.0
  %1238 = vmatprep.mubr.f32.mxu0 0.0
  %1239 = vmatmul.mubr.f32.gmra.mrb[0].mxu0 %v1101
  %v1240 = vpop.f32.mrb[0].mxu0
  %v1241 = vadd.f32 0.0, %v1240
  %v1242 = vpop.f32.mrb[0].mxu0
  %1243 = vdwg.mxu0
  %v1244 = vadd.f32 %v309, %v1241
  %v1245 = vxor.u32 %v1244, 2147483648
  %v1246 = vmul.f32 %v1245, 1.442695
  %v1247 = vpow.pop %v1246
  %v1248 = vadd.f32 %v1247, 1.0
  %v1249 = vrcp.pop %v1248
  %v1250 = vmul.f32 1.0, %v1249
  %v1251 = vtanh.pop %v1244
  %v1252 = vmul.f32 %v1250, %v1091
  %1254 = vrot.lane.b32.xlu0 %v1251, 64
  %v1255 = vpop.permute.xlu0 %1254
  %v1257 = vmul.f32 %v1250, %v1255
  %1259 = vrot.lane.b32.xlu0 %v1257, 32
  %v1260 = vpop.permute.xlu0 %1259
  %v1262 = vadd.f32 %v1252, %v1260
  %v1263 = vtanh.pop %v1262
  %1265 = vrot.lane.b32.xlu0 %v1263, 64
  %v1266 = vpop.permute.xlu0 %1265
  %v1268 = vmul.f32 %v1250, %v1266
  %1270 = vrot.lane.b32.xlu0 %v1268, 32
  %v1271 = vpop.permute.xlu0 %1270
  %v1272 = vsel %vm48, %v1271, 0
  %1274 = vmatprep.subr.mxu0 0.0
  %1275 = vmatpush1.msra.mxu0 %v479
  %1276 = vmatprep.subr.mxu0 0.0
  %1277 = vmatpush1.msra.mxu0 %v480
  %1278 = vmatprep.subr.mxu0 0.0
  %1279 = vmatpush1.msra.mxu0 %v481
  %1280 = vmatprep.subr.mxu0 0.0
  %1281 = vmatpush1.msra.mxu0 %v482
  %1282 = vmatprep.subr.mxu0 0.0
  %1283 = vmatpush1.msra.mxu0 0.0
  %1284 = vmatprep.subr.mxu0 0.0
  %1285 = vmatpush1.msra.mxu0 0.0
  %1286 = vmatprep.subr.mxu0 0.0
  %1287 = vmatpush1.msra.mxu0 0.0
  %1288 = vmatprep.subr.mxu0 0.0
  %1289 = vmatpush1.msra.mxu0 0.0
  %1290 = vmatprep.subr.mxu0 0.0
  %1291 = vmatpush1.msra.mxu0 0.0
  %1292 = vmatprep.subr.mxu0 0.0
  %1293 = vmatpush1.msra.mxu0 0.0
  %1294 = vmatprep.subr.mxu0 0.0
  %1295 = vmatpush1.msra.mxu0 0.0
  %1296 = vmatprep.subr.mxu0 0.0
  %1297 = vmatpush1.msra.mxu0 0.0
  %1298 = vmatprep.subr.mxu0 0.0
  %1299 = vmatpush1.msra.mxu0 0.0
  %1300 = vmatprep.subr.mxu0 0.0
  %1301 = vmatpush1.msra.mxu0 0.0
  %1302 = vmatprep.subr.mxu0 0.0
  %1303 = vmatpush1.msra.mxu0 0.0
  %1304 = vmatprep.subr.mxu0 0.0
  %1305 = vmatpush1.msra.mxu0 0.0
  %1306 = vmatprep.subr.mxu0 0.0
  %1307 = vmatpush1.msra.mxu0 0.0
  %1308 = vmatprep.subr.mxu0 0.0
  %1309 = vmatpush1.msra.mxu0 0.0
  %1310 = vmatprep.subr.mxu0 0.0
  %1311 = vmatpush1.msra.mxu0 0.0
  %1312 = vmatprep.subr.mxu0 0.0
  %1313 = vmatpush1.msra.mxu0 0.0
  %1314 = vmatprep.subr.mxu0 0.0
  %1315 = vmatpush1.msra.mxu0 0.0
  %1316 = vmatprep.subr.mxu0 0.0
  %1317 = vmatpush1.msra.mxu0 0.0
  %1318 = vmatprep.subr.mxu0 0.0
  %1319 = vmatpush1.msra.mxu0 0.0
  %1320 = vmatprep.subr.mxu0 0.0
  %1321 = vmatpush1.msra.mxu0 0.0
  %1322 = vmatprep.subr.mxu0 0.0
  %1323 = vmatpush1.msra.mxu0 0.0
  %1324 = vmatprep.subr.mxu0 0.0
  %1325 = vmatpush1.msra.mxu0 0.0
  %1326 = vmatprep.subr.mxu0 0.0
  %1327 = vmatpush1.msra.mxu0 0.0
  %1328 = vmatprep.subr.mxu0 0.0
  %1329 = vmatpush1.msra.mxu0 0.0
  %1330 = vmatprep.subr.mxu0 0.0
  %1331 = vmatpush1.msra.mxu0 0.0
  %1332 = vmatprep.subr.mxu0 0.0
  %1333 = vmatpush1.msra.mxu0 0.0
  %1334 = vmatprep.subr.mxu0 0.0
  %1335 = vmatpush1.msra.mxu0 0.0
  %1336 = vmatprep.subr.mxu0 0.0
  %1337 = vmatpush1.msra.mxu0 0.0
  %1338 = vmatprep.mubr.f32.mxu0 0.0
  %1339 = vmatmul.mubr.f32.gmra.mrb[0].mxu0 %v1272
  %v1340 = vpop.f32.mrb[0].mxu0
  %v1341 = vadd.f32 %v459, %v1340
  %v1342 = vpop.f32.mrb[0].mxu0
  %1343 = vdwg.mxu0
  %1344 = vst [vmem:[%s8 + $0x20] sm:$0xff] %v1341
  %1345 = vmatprep.subr.mxu0 0.0
  %1346 = vmatpush1.msra.mxu0 %v190
  %1347 = vmatprep.subr.mxu0 0.0
  %1348 = vmatpush1.msra.mxu0 %v191
  %1349 = vmatprep.subr.mxu0 0.0
  %1350 = vmatpush1.msra.mxu0 %v192
  %1351 = vmatprep.subr.mxu0 0.0
  %1352 = vmatpush1.msra.mxu0 %v193
  %1353 = vmatprep.subr.mxu0 0.0
  %1354 = vmatpush1.msra.mxu0 0.0
  %1355 = vmatprep.subr.mxu0 0.0
  %1356 = vmatpush1.msra.mxu0 0.0
  %1357 = vmatprep.subr.mxu0 0.0
  %1358 = vmatpush1.msra.mxu0 0.0
  %1359 = vmatprep.subr.mxu0 0.0
  %1360 = vmatpush1.msra.mxu0 0.0
  %1361 = vmatprep.subr.mxu0 0.0
  %1362 = vmatpush1.msra.mxu0 0.0
  %1363 = vmatprep.subr.mxu0 0.0
  %1364 = vmatpush1.msra.mxu0 0.0
  %1365 = vmatprep.subr.mxu0 0.0
  %1366 = vmatpush1.msra.mxu0 0.0
  %1367 = vmatprep.subr.mxu0 0.0
  %1368 = vmatpush1.msra.mxu0 0.0
  %1369 = vmatprep.subr.mxu0 0.0
  %1370 = vmatpush1.msra.mxu0 0.0
  %1371 = vmatprep.subr.mxu0 0.0
  %1372 = vmatpush1.msra.mxu0 0.0
  %1373 = vmatprep.subr.mxu0 0.0
  %1374 = vmatpush1.msra.mxu0 0.0
  %1375 = vmatprep.subr.mxu0 0.0
  %1376 = vmatpush1.msra.mxu0 0.0
  %1377 = vmatprep.subr.mxu0 0.0
  %1378 = vmatpush1.msra.mxu0 0.0
  %1379 = vmatprep.subr.mxu0 0.0
  %1380 = vmatpush1.msra.mxu0 0.0
  %1381 = vmatprep.subr.mxu0 0.0
  %1382 = vmatpush1.msra.mxu0 0.0
  %1383 = vmatprep.subr.mxu0 0.0
  %1384 = vmatpush1.msra.mxu0 0.0
  %1385 = vmatprep.subr.mxu0 0.0
  %1386 = vmatpush1.msra.mxu0 0.0
  %1387 = vmatprep.subr.mxu0 0.0
  %1388 = vmatpush1.msra.mxu0 0.0
  %1389 = vmatprep.subr.mxu0 0.0
  %1390 = vmatpush1.msra.mxu0 0.0
  %1391 = vmatprep.subr.mxu0 0.0
  %1392 = vmatpush1.msra.mxu0 0.0
  %1393 = vmatprep.subr.mxu0 0.0
  %1394 = vmatpush1.msra.mxu0 0.0
  %1395 = vmatprep.subr.mxu0 0.0
  %1396 = vmatpush1.msra.mxu0 0.0
  %1397 = vmatprep.subr.mxu0 0.0
  %1398 = vmatpush1.msra.mxu0 0.0
  %1399 = vmatprep.subr.mxu0 0.0
  %1400 = vmatpush1.msra.mxu0 0.0
  %1401 = vmatprep.subr.mxu0 0.0
  %1402 = vmatpush1.msra.mxu0 0.0
  %1403 = vmatprep.subr.mxu0 0.0
  %1404 = vmatpush1.msra.mxu0 0.0
  %1405 = vmatprep.subr.mxu0 0.0
  %1406 = vmatpush1.msra.mxu0 0.0
  %1407 = vmatprep.subr.mxu0 0.0
  %1408 = vmatpush1.msra.mxu0 0.0
  %1409 = vmatprep.mubr.f32.mxu0 0.0
  %1410 = vmatmul.mubr.f32.gmra.mrb[0].mxu0 %v1272
  %v1411 = vpop.f32.mrb[0].mxu0
  %v1412 = vadd.f32 0.0, %v1411
  %v1413 = vpop.f32.mrb[0].mxu0
  %1414 = vdwg.mxu0
  %v1415 = vadd.f32 %v314, %v1412
  %v1416 = vxor.u32 %v1415, 2147483648
  %v1417 = vmul.f32 %v1416, 1.442695
  %v1418 = vpow.pop %v1417
  %v1419 = vadd.f32 %v1418, 1.0
  %v1420 = vrcp.pop %v1419
  %v1421 = vmul.f32 1.0, %v1420
  %v1422 = vtanh.pop %v1415
  %v1423 = vmul.f32 %v1421, %v1262
  %1425 = vrot.lane.b32.xlu0 %v1422, 64
  %v1426 = vpop.permute.xlu0 %1425
  %v1428 = vmul.f32 %v1421, %v1426
  %1430 = vrot.lane.b32.xlu0 %v1428, 32
  %v1431 = vpop.permute.xlu0 %1430
  %v1433 = vadd.f32 %v1423, %v1431
  %v1434 = vtanh.pop %v1433
  %1436 = vrot.lane.b32.xlu0 %v1434, 64
  %v1437 = vpop.permute.xlu0 %1436
  %v1439 = vmul.f32 %v1421, %v1437
  %1441 = vrot.lane.b32.xlu0 %v1439, 32
  %v1442 = vpop.permute.xlu0 %1441
  %v1443 = vsel %vm48, %v1442, 0
  %1445 = vmatprep.subr.mxu0 0.0
  %1446 = vmatpush1.msra.mxu0 %v479
  %1447 = vmatprep.subr.mxu0 0.0
  %1448 = vmatpush1.msra.mxu0 %v480
  %1449 = vmatprep.subr.mxu0 0.0
  %1450 = vmatpush1.msra.mxu0 %v481
  %1451 = vmatprep.subr.mxu0 0.0
  %1452 = vmatpush1.msra.mxu0 %v482
  %1453 = vmatprep.subr.mxu0 0.0
  %1454 = vmatpush1.msra.mxu0 0.0
  %1455 = vmatprep.subr.mxu0 0.0
  %1456 = vmatpush1.msra.mxu0 0.0
  %1457 = vmatprep.subr.mxu0 0.0
  %1458 = vmatpush1.msra.mxu0 0.0
  %1459 = vmatprep.subr.mxu0 0.0
  %1460 = vmatpush1.msra.mxu0 0.0
  %1461 = vmatprep.subr.mxu0 0.0
  %1462 = vmatpush1.msra.mxu0 0.0
  %1463 = vmatprep.subr.mxu0 0.0
  %1464 = vmatpush1.msra.mxu0 0.0
  %1465 = vmatprep.subr.mxu0 0.0
  %1466 = vmatpush1.msra.mxu0 0.0
  %1467 = vmatprep.subr.mxu0 0.0
  %1468 = vmatpush1.msra.mxu0 0.0
  %1469 = vmatprep.subr.mxu0 0.0
  %1470 = vmatpush1.msra.mxu0 0.0
  %1471 = vmatprep.subr.mxu0 0.0
  %1472 = vmatpush1.msra.mxu0 0.0
  %1473 = vmatprep.subr.mxu0 0.0
  %1474 = vmatpush1.msra.mxu0 0.0
  %1475 = vmatprep.subr.mxu0 0.0
  %1476 = vmatpush1.msra.mxu0 0.0
  %1477 = vmatprep.subr.mxu0 0.0
  %1478 = vmatpush1.msra.mxu0 0.0
  %1479 = vmatprep.subr.mxu0 0.0
  %1480 = vmatpush1.msra.mxu0 0.0
  %1481 = vmatprep.subr.mxu0 0.0
  %1482 = vmatpush1.msra.mxu0 0.0
  %1483 = vmatprep.subr.mxu0 0.0
  %1484 = vmatpush1.msra.mxu0 0.0
  %1485 = vmatprep.subr.mxu0 0.0
  %1486 = vmatpush1.msra.mxu0 0.0
  %1487 = vmatprep.subr.mxu0 0.0
  %1488 = vmatpush1.msra.mxu0 0.0
  %1489 = vmatprep.subr.mxu0 0.0
  %1490 = vmatpush1.msra.mxu0 0.0
  %1491 = vmatprep.subr.mxu0 0.0
  %1492 = vmatpush1.msra.mxu0 0.0
  %1493 = vmatprep.subr.mxu0 0.0
  %1494 = vmatpush1.msra.mxu0 0.0
  %1495 = vmatprep.subr.mxu0 0.0
  %1496 = vmatpush1.msra.mxu0 0.0
  %1497 = vmatprep.subr.mxu0 0.0
  %1498 = vmatpush1.msra.mxu0 0.0
  %1499 = vmatprep.subr.mxu0 0.0
  %1500 = vmatpush1.msra.mxu0 0.0
  %1501 = vmatprep.subr.mxu0 0.0
  %1502 = vmatpush1.msra.mxu0 0.0
  %1503 = vmatprep.subr.mxu0 0.0
  %1504 = vmatpush1.msra.mxu0 0.0
  %1505 = vmatprep.subr.mxu0 0.0
  %1506 = vmatpush1.msra.mxu0 0.0
  %1507 = vmatprep.subr.mxu0 0.0
  %1508 = vmatpush1.msra.mxu0 0.0
  %1509 = vmatprep.mubr.f32.mxu0 0.0
  %1510 = vmatmul.mubr.f32.gmra.mrb[0].mxu0 %v1443
  %v1511 = vpop.f32.mrb[0].mxu0
  %v1512 = vadd.f32 %v464, %v1511
  %v1513 = vpop.f32.mrb[0].mxu0
  %1514 = vdwg.mxu0
  %1515 = vst [vmem:[%s8 + $0x28] sm:$0xff] %v1512
  %1516 = vmatprep.subr.mxu0 0.0
  %1517 = vmatpush1.msra.mxu0 %v190
  %1518 = vmatprep.subr.mxu0 0.0
  %1519 = vmatpush1.msra.mxu0 %v191
  %1520 = vmatprep.subr.mxu0 0.0
  %1521 = vmatpush1.msra.mxu0 %v192
  %1522 = vmatprep.subr.mxu0 0.0
  %1523 = vmatpush1.msra.mxu0 %v193
  %1524 = vmatprep.subr.mxu0 0.0
  %1525 = vmatpush1.msra.mxu0 0.0
  %1526 = vmatprep.subr.mxu0 0.0
  %1527 = vmatpush1.msra.mxu0 0.0
  %1528 = vmatprep.subr.mxu0 0.0
  %1529 = vmatpush1.msra.mxu0 0.0
  %1530 = vmatprep.subr.mxu0 0.0
  %1531 = vmatpush1.msra.mxu0 0.0
  %1532 = vmatprep.subr.mxu0 0.0
  %1533 = vmatpush1.msra.mxu0 0.0
  %1534 = vmatprep.subr.mxu0 0.0
  %1535 = vmatpush1.msra.mxu0 0.0
  %1536 = vmatprep.subr.mxu0 0.0
  %1537 = vmatpush1.msra.mxu0 0.0
  %1538 = vmatprep.subr.mxu0 0.0
  %1539 = vmatpush1.msra.mxu0 0.0
  %1540 = vmatprep.subr.mxu0 0.0
  %1541 = vmatpush1.msra.mxu0 0.0
  %1542 = vmatprep.subr.mxu0 0.0
  %1543 = vmatpush1.msra.mxu0 0.0
  %1544 = vmatprep.subr.mxu0 0.0
  %1545 = vmatpush1.msra.mxu0 0.0
  %1546 = vmatprep.subr.mxu0 0.0
  %1547 = vmatpush1.msra.mxu0 0.0
  %1548 = vmatprep.subr.mxu0 0.0
  %1549 = vmatpush1.msra.mxu0 0.0
  %1550 = vmatprep.subr.mxu0 0.0
  %1551 = vmatpush1.msra.mxu0 0.0
  %1552 = vmatprep.subr.mxu0 0.0
  %1553 = vmatpush1.msra.mxu0 0.0
  %1554 = vmatprep.subr.mxu0 0.0
  %1555 = vmatpush1.msra.mxu0 0.0
  %1556 = vmatprep.subr.mxu0 0.0
  %1557 = vmatpush1.msra.mxu0 0.0
  %1558 = vmatprep.subr.mxu0 0.0
  %1559 = vmatpush1.msra.mxu0 0.0
  %1560 = vmatprep.subr.mxu0 0.0
  %1561 = vmatpush1.msra.mxu0 0.0
  %1562 = vmatprep.subr.mxu0 0.0
  %1563 = vmatpush1.msra.mxu0 0.0
  %1564 = vmatprep.subr.mxu0 0.0
  %1565 = vmatpush1.msra.mxu0 0.0
  %1566 = vmatprep.subr.mxu0 0.0
  %1567 = vmatpush1.msra.mxu0 0.0
  %1568 = vmatprep.subr.mxu0 0.0
  %1569 = vmatpush1.msra.mxu0 0.0
  %1570 = vmatprep.subr.mxu0 0.0
  %1571 = vmatpush1.msra.mxu0 0.0
  %1572 = vmatprep.subr.mxu0 0.0
  %1573 = vmatpush1.msra.mxu0 0.0
  %1574 = vmatprep.subr.mxu0 0.0
  %1575 = vmatpush1.msra.mxu0 0.0
  %1576 = vmatprep.subr.mxu0 0.0
  %1577 = vmatpush1.msra.mxu0 0.0
  %1578 = vmatprep.subr.mxu0 0.0
  %1579 = vmatpush1.msra.mxu0 0.0
  %1580 = vmatprep.mubr.f32.mxu0 0.0
  %1581 = vmatmul.mubr.f32.gmra.mrb[0].mxu0 %v1443
  %v1582 = vpop.f32.mrb[0].mxu0
  %v1583 = vadd.f32 0.0, %v1582
  %v1584 = vpop.f32.mrb[0].mxu0
  %1585 = vdwg.mxu0
  %v1586 = vadd.f32 %v319, %v1583
  %v1587 = vxor.u32 %v1586, 2147483648
  %v1588 = vmul.f32 %v1587, 1.442695
  %v1589 = vpow.pop %v1588
  %v1590 = vadd.f32 %v1589, 1.0
  %v1591 = vrcp.pop %v1590
  %v1592 = vmul.f32 1.0, %v1591
  %v1593 = vtanh.pop %v1586
  %v1594 = vmul.f32 %v1592, %v1433
  %1596 = vrot.lane.b32.xlu0 %v1593, 64
  %v1597 = vpop.permute.xlu0 %1596
  %v1599 = vmul.f32 %v1592, %v1597
  %1601 = vrot.lane.b32.xlu0 %v1599, 32
  %v1602 = vpop.permute.xlu0 %1601
  %v1604 = vadd.f32 %v1594, %v1602
  %v1605 = vtanh.pop %v1604
  %1607 = vrot.lane.b32.xlu0 %v1605, 64
  %v1608 = vpop.permute.xlu0 %1607
  %v1610 = vmul.f32 %v1592, %v1608
  %1612 = vrot.lane.b32.xlu0 %v1610, 32
  %v1613 = vpop.permute.xlu0 %1612
  %v1614 = vsel %vm48, %v1613, 0
  %1616 = vmatprep.subr.mxu0 0.0
  %1617 = vmatpush1.msra.mxu0 %v479
  %1618 = vmatprep.subr.mxu0 0.0
  %1619 = vmatpush1.msra.mxu0 %v480
  %1620 = vmatprep.subr.mxu0 0.0
  %1621 = vmatpush1.msra.mxu0 %v481
  %1622 = vmatprep.subr.mxu0 0.0
  %1623 = vmatpush1.msra.mxu0 %v482
  %1624 = vmatprep.subr.mxu0 0.0
  %1625 = vmatpush1.msra.mxu0 0.0
  %1626 = vmatprep.subr.mxu0 0.0
  %1627 = vmatpush1.msra.mxu0 0.0
  %1628 = vmatprep.subr.mxu0 0.0
  %1629 = vmatpush1.msra.mxu0 0.0
  %1630 = vmatprep.subr.mxu0 0.0
  %1631 = vmatpush1.msra.mxu0 0.0
  %1632 = vmatprep.subr.mxu0 0.0
  %1633 = vmatpush1.msra.mxu0 0.0
  %1634 = vmatprep.subr.mxu0 0.0
  %1635 = vmatpush1.msra.mxu0 0.0
  %1636 = vmatprep.subr.mxu0 0.0
  %1637 = vmatpush1.msra.mxu0 0.0
  %1638 = vmatprep.subr.mxu0 0.0
  %1639 = vmatpush1.msra.mxu0 0.0
  %1640 = vmatprep.subr.mxu0 0.0
  %1641 = vmatpush1.msra.mxu0 0.0
  %1642 = vmatprep.subr.mxu0 0.0
  %1643 = vmatpush1.msra.mxu0 0.0
  %1644 = vmatprep.subr.mxu0 0.0
  %1645 = vmatpush1.msra.mxu0 0.0
  %1646 = vmatprep.subr.mxu0 0.0
  %1647 = vmatpush1.msra.mxu0 0.0
  %1648 = vmatprep.subr.mxu0 0.0
  %1649 = vmatpush1.msra.mxu0 0.0
  %1650 = vmatprep.subr.mxu0 0.0
  %1651 = vmatpush1.msra.mxu0 0.0
  %1652 = vmatprep.subr.mxu0 0.0
  %1653 = vmatpush1.msra.mxu0 0.0
  %1654 = vmatprep.subr.mxu0 0.0
  %1655 = vmatpush1.msra.mxu0 0.0
  %1656 = vmatprep.subr.mxu0 0.0
  %1657 = vmatpush1.msra.mxu0 0.0
  %1658 = vmatprep.subr.mxu0 0.0
  %1659 = vmatpush1.msra.mxu0 0.0
  %1660 = vmatprep.subr.mxu0 0.0
  %1661 = vmatpush1.msra.mxu0 0.0
  %1662 = vmatprep.subr.mxu0 0.0
  %1663 = vmatpush1.msra.mxu0 0.0
  %1664 = vmatprep.subr.mxu0 0.0
  %1665 = vmatpush1.msra.mxu0 0.0
  %1666 = vmatprep.subr.mxu0 0.0
  %1667 = vmatpush1.msra.mxu0 0.0
  %1668 = vmatprep.subr.mxu0 0.0
  %1669 = vmatpush1.msra.mxu0 0.0
  %1670 = vmatprep.subr.mxu0 0.0
  %1671 = vmatpush1.msra.mxu0 0.0
  %1672 = vmatprep.subr.mxu0 0.0
  %1673 = vmatpush1.msra.mxu0 0.0
  %1674 = vmatprep.subr.mxu0 0.0
  %1675 = vmatpush1.msra.mxu0 0.0
  %1676 = vmatprep.subr.mxu0 0.0
  %1677 = vmatpush1.msra.mxu0 0.0
  %1678 = vmatprep.subr.mxu0 0.0
  %1679 = vmatpush1.msra.mxu0 0.0
  %1680 = vmatprep.mubr.f32.mxu0 0.0
  %1681 = vmatmul.mubr.f32.gmra.mrb[0].mxu0 %v1614
  %v1682 = vpop.f32.mrb[0].mxu0
  %v1683 = vadd.f32 %v469, %v1682
  %v1684 = vpop.f32.mrb[0].mxu0
  %1685 = vdwg.mxu0
  %1686 = vst [vmem:[%s8 + $0x30] sm:$0xff] %v1683
  %1687 = vmatprep.subr.mxu0 0.0
  %1688 = vmatpush1.msra.mxu0 %v190
  %1689 = vmatprep.subr.mxu0 0.0
  %1690 = vmatpush1.msra.mxu0 %v191
  %1691 = vmatprep.subr.mxu0 0.0
  %1692 = vmatpush1.msra.mxu0 %v192
  %1693 = vmatprep.subr.mxu0 0.0
  %1694 = vmatpush1.msra.mxu0 %v193
  %1695 = vmatprep.subr.mxu0 0.0
  %1696 = vmatpush1.msra.mxu0 0.0
  %1697 = vmatprep.subr.mxu0 0.0
  %1698 = vmatpush1.msra.mxu0 0.0
  %1699 = vmatprep.subr.mxu0 0.0
  %1700 = vmatpush1.msra.mxu0 0.0
  %1701 = vmatprep.subr.mxu0 0.0
  %1702 = vmatpush1.msra.mxu0 0.0
  %1703 = vmatprep.subr.mxu0 0.0
  %1704 = vmatpush1.msra.mxu0 0.0
  %1705 = vmatprep.subr.mxu0 0.0
  %1706 = vmatpush1.msra.mxu0 0.0
  %1707 = vmatprep.subr.mxu0 0.0
  %1708 = vmatpush1.msra.mxu0 0.0
  %1709 = vmatprep.subr.mxu0 0.0
  %1710 = vmatpush1.msra.mxu0 0.0
  %1711 = vmatprep.subr.mxu0 0.0
  %1712 = vmatpush1.msra.mxu0 0.0
  %1713 = vmatprep.subr.mxu0 0.0
  %1714 = vmatpush1.msra.mxu0 0.0
  %1715 = vmatprep.subr.mxu0 0.0
  %1716 = vmatpush1.msra.mxu0 0.0
  %1717 = vmatprep.subr.mxu0 0.0
  %1718 = vmatpush1.msra.mxu0 0.0
  %1719 = vmatprep.subr.mxu0 0.0
  %1720 = vmatpush1.msra.mxu0 0.0
  %1721 = vmatprep.subr.mxu0 0.0
  %1722 = vmatpush1.msra.mxu0 0.0
  %1723 = vmatprep.subr.mxu0 0.0
  %1724 = vmatpush1.msra.mxu0 0.0
  %1725 = vmatprep.subr.mxu0 0.0
  %1726 = vmatpush1.msra.mxu0 0.0
  %1727 = vmatprep.subr.mxu0 0.0
  %1728 = vmatpush1.msra.mxu0 0.0
  %1729 = vmatprep.subr.mxu0 0.0
  %1730 = vmatpush1.msra.mxu0 0.0
  %1731 = vmatprep.subr.mxu0 0.0
  %1732 = vmatpush1.msra.mxu0 0.0
  %1733 = vmatprep.subr.mxu0 0.0
  %1734 = vmatpush1.msra.mxu0 0.0
  %1735 = vmatprep.subr.mxu0 0.0
  %1736 = vmatpush1.msra.mxu0 0.0
  %1737 = vmatprep.subr.mxu0 0.0
  %1738 = vmatpush1.msra.mxu0 0.0
  %1739 = vmatprep.subr.mxu0 0.0
  %1740 = vmatpush1.msra.mxu0 0.0
  %1741 = vmatprep.subr.mxu0 0.0
  %1742 = vmatpush1.msra.mxu0 0.0
  %1743 = vmatprep.subr.mxu0 0.0
  %1744 = vmatpush1.msra.mxu0 0.0
  %1745 = vmatprep.subr.mxu0 0.0
  %1746 = vmatpush1.msra.mxu0 0.0
  %1747 = vmatprep.subr.mxu0 0.0
  %1748 = vmatpush1.msra.mxu0 0.0
  %1749 = vmatprep.subr.mxu0 0.0
  %1750 = vmatpush1.msra.mxu0 0.0
  %1751 = vmatprep.mubr.f32.mxu0 0.0
  %1752 = vmatmul.mubr.f32.gmra.mrb[0].mxu0 %v1614
  %v1753 = vpop.f32.mrb[0].mxu0
  %v1754 = vadd.f32 0.0, %v1753
  %v1755 = vpop.f32.mrb[0].mxu0
  %1756 = vdwg.mxu0
  %v1757 = vadd.f32 %v324, %v1754
  %v1758 = vxor.u32 %v1757, 2147483648
  %v1759 = vmul.f32 %v1758, 1.442695
  %v1760 = vpow.pop %v1759
  %v1761 = vadd.f32 %v1760, 1.0
  %v1762 = vrcp.pop %v1761
  %v1763 = vmul.f32 1.0, %v1762
  %v1764 = vtanh.pop %v1757
  %v1765 = vmul.f32 %v1763, %v1604
  %1767 = vrot.lane.b32.xlu0 %v1764, 64
  %v1768 = vpop.permute.xlu0 %1767
  %v1770 = vmul.f32 %v1763, %v1768
  %1772 = vrot.lane.b32.xlu0 %v1770, 32
  %v1773 = vpop.permute.xlu0 %1772
  %v1775 = vadd.f32 %v1765, %v1773
  %v1776 = vtanh.pop %v1775
  %1778 = vrot.lane.b32.xlu0 %v1776, 64
  %v1779 = vpop.permute.xlu0 %1778
  %v1781 = vmul.f32 %v1763, %v1779
  %1783 = vrot.lane.b32.xlu0 %v1781, 32
  %v1784 = vpop.permute.xlu0 %1783
  %v1785 = vsel %vm48, %v1784, 0
  %1787 = vmatprep.subr.mxu0 0.0
  %1788 = vmatpush1.msra.mxu0 %v479
  %1789 = vmatprep.subr.mxu0 0.0
  %1790 = vmatpush1.msra.mxu0 %v480
  %1791 = vmatprep.subr.mxu0 0.0
  %1792 = vmatpush1.msra.mxu0 %v481
  %1793 = vmatprep.subr.mxu0 0.0
  %1794 = vmatpush1.msra.mxu0 %v482
  %1795 = vmatprep.subr.mxu0 0.0
  %1796 = vmatpush1.msra.mxu0 0.0
  %1797 = vmatprep.subr.mxu0 0.0
  %1798 = vmatpush1.msra.mxu0 0.0
  %1799 = vmatprep.subr.mxu0 0.0
  %1800 = vmatpush1.msra.mxu0 0.0
  %1801 = vmatprep.subr.mxu0 0.0
  %1802 = vmatpush1.msra.mxu0 0.0
  %1803 = vmatprep.subr.mxu0 0.0
  %1804 = vmatpush1.msra.mxu0 0.0
  %1805 = vmatprep.subr.mxu0 0.0
  %1806 = vmatpush1.msra.mxu0 0.0
  %1807 = vmatprep.subr.mxu0 0.0
  %1808 = vmatpush1.msra.mxu0 0.0
  %1809 = vmatprep.subr.mxu0 0.0
  %1810 = vmatpush1.msra.mxu0 0.0
  %1811 = vmatprep.subr.mxu0 0.0
  %1812 = vmatpush1.msra.mxu0 0.0
  %1813 = vmatprep.subr.mxu0 0.0
  %1814 = vmatpush1.msra.mxu0 0.0
  %1815 = vmatprep.subr.mxu0 0.0
  %1816 = vmatpush1.msra.mxu0 0.0
  %1817 = vmatprep.subr.mxu0 0.0
  %1818 = vmatpush1.msra.mxu0 0.0
  %1819 = vmatprep.subr.mxu0 0.0
  %1820 = vmatpush1.msra.mxu0 0.0
  %1821 = vmatprep.subr.mxu0 0.0
  %1822 = vmatpush1.msra.mxu0 0.0
  %1823 = vmatprep.subr.mxu0 0.0
  %1824 = vmatpush1.msra.mxu0 0.0
  %1825 = vmatprep.subr.mxu0 0.0
  %1826 = vmatpush1.msra.mxu0 0.0
  %1827 = vmatprep.subr.mxu0 0.0
  %1828 = vmatpush1.msra.mxu0 0.0
  %1829 = vmatprep.subr.mxu0 0.0
  %1830 = vmatpush1.msra.mxu0 0.0
  %1831 = vmatprep.subr.mxu0 0.0
  %1832 = vmatpush1.msra.mxu0 0.0
  %1833 = vmatprep.subr.mxu0 0.0
  %1834 = vmatpush1.msra.mxu0 0.0
  %1835 = vmatprep.subr.mxu0 0.0
  %1836 = vmatpush1.msra.mxu0 0.0
  %1837 = vmatprep.subr.mxu0 0.0
  %1838 = vmatpush1.msra.mxu0 0.0
  %1839 = vmatprep.subr.mxu0 0.0
  %1840 = vmatpush1.msra.mxu0 0.0
  %1841 = vmatprep.subr.mxu0 0.0
  %1842 = vmatpush1.msra.mxu0 0.0
  %1843 = vmatprep.subr.mxu0 0.0
  %1844 = vmatpush1.msra.mxu0 0.0
  %1845 = vmatprep.subr.mxu0 0.0
  %1846 = vmatpush1.msra.mxu0 0.0
  %1847 = vmatprep.subr.mxu0 0.0
  %1848 = vmatpush1.msra.mxu0 0.0
  %1849 = vmatprep.subr.mxu0 0.0
  %1850 = vmatpush1.msra.mxu0 0.0
  %1851 = vmatprep.mubr.f32.mxu0 0.0
  %1852 = vmatmul.mubr.f32.gmra.mrb[0].mxu0 %v1785
  %v1853 = vpop.f32.mrb[0].mxu0
  %v1854 = vadd.f32 %v474, %v1853
  %v1855 = vpop.f32.mrb[0].mxu0
  %1856 = vdwg.mxu0
  %1857 = vst [vmem:[%s8 + $0x38] sm:$0xff] %v1854
  %1859 = vrot.lane.b32.xlu0 %v1775, 64
  %v1860 = vpop.permute.xlu0 %1859
  %vm1862 = vcmask 1048320
  %1863 = vst.msk [vmem:[%s8 + $0x38] sm:$0xff] %vm1862, %v1860
  // Predicated region
  $region34: #{feudal_manager_forward.1} parent=0 // pred_check
    _
  $region35: #{feudal_manager_forward.1} parent=0 // pred_check_branch
    %1865 = sbr.rel (0) target = $region37
  $region36: #{feudal_manager_forward.1} parent=0 // pred_region
    _
  $region37: #{feudal_manager_forward.1} parent=0 // pred_fallthru
    _
  // Predicated region
  $region38: #{feudal_manager_forward.1} parent=0 // pred_check
    _
  $region39: #{feudal_manager_forward.1} parent=0 // pred_check_branch
    %1867 = sbr.rel (0) target = $region41
  $region40: #{feudal_manager_forward.1} parent=0 // pred_region
    _
  $region41: #{feudal_manager_forward.1} parent=0 // pred_fallthru
    _

</llo_original>
